<compile_context>
chip_gen: v5e
topology: v5e:2x2
jax: 0.10.0
libtpu: 0.0.40
codegen_flags: <defaults>
</compile_context>

<pallas_src>
import numpy as np
import jax
import jax.numpy as jnp
from jax.experimental import pallas as pl
from jax.experimental.pallas import tpu as pltpu


def _round_up(x, m):
    return ((x + m - 1) // m) * m


# ----------------------------------------------------------------------------
# Pallas kernel 1: feature_abstract (support + query merged into one launch)
#
#   hx[b, c, l] = relu( sum_s taps[s, b, c] * E[s, b, l] )   grouped conv + ReLU
#   out[b, :]   = bias + sum_c hx[b, c, :] @ W[c]            concat+AvgPool1d(2)+fc
#                                                            folded into W
# E / taps are the compact activations; the per-tap broadcast lives entirely in
# VMEM/vregs (no replicated HBM traffic).
# ----------------------------------------------------------------------------
def feature_abstract_kernel(e_ref, taps_ref, w_ref, b_ref, out_ref):
    # e:    [S, TB, L]   f32
    # taps: [S, TB, 2C]  f32
    # w:    [2C, L, TH]  bf16  (concat + AvgPool1d(2) + fc folded, pre-cast)
    # b:    [1, TH]      f32
    # out:  [TB, TH]     f32
    S = e_ref.shape[0]
    C2 = w_ref.shape[0]
    # hoist the per-tap loads (small: S * TB * (L + 2C) floats)
    e = [e_ref[s] for s in range(S)]             # each [TB, L]
    taps = [taps_ref[s] for s in range(S)]       # each [TB, 2C]

    acc = jnp.zeros(out_ref.shape, jnp.float32)
    for c in range(C2):                          # static unroll: 2*conv_num channels
        hx = taps[0][:, c:c + 1] * e[0]          # lane-broadcast tap over L
        for s in range(1, S):                    # static unroll: conv_size taps
            hx = hx + taps[s][:, c:c + 1] * e[s]
        hx = jnp.maximum(hx, 0.0).astype(jnp.bfloat16)          # ReLU, MXU dtype
        acc = acc + jnp.dot(hx, w_ref[c],                        # [TB,L] @ [L,TH]
                            preferred_element_type=jnp.float32)
    out_ref[...] = acc + b_ref[...]


def feature_abstract_pallas(e, taps, w3, b2):
    S, BT, L = e.shape
    C2 = taps.shape[2]
    Hp = w3.shape[2]

    # Row tile: as large as VMEM comfortably allows (<=128, multiple of 8) and
    # chosen so the batch grid has >=2 steps whenever possible (v7x megacore).
    TB = min(128, max(8, _round_up(pl.cdiv(BT, 2), 8)))
    BTp = _round_up(BT, TB)
    if BTp != BT:
        e = jnp.pad(e, ((0, 0), (0, BTp - BT), (0, 0)))
        taps = jnp.pad(taps, ((0, 0), (0, BTp - BT), (0, 0)))

    # Column tile over the 128-padded hidden dim: bounds resident weight /
    # output VMEM at production H (v7x: 64 MiB physical VMEM).
    TH = Hp if Hp <= 512 else 512          # Hp is pre-rounded so TH divides Hp
    grid = (BTp // TB, Hp // TH)

    out = pl.pallas_call(
        feature_abstract_kernel,
        out_shape=jax.ShapeDtypeStruct((BTp, Hp), jnp.float32),
        grid=grid,
        in_specs=[
            pl.BlockSpec((S, TB, L), lambda i, j: (0, i, 0)),
            pl.BlockSpec((S, TB, C2), lambda i, j: (0, i, 0)),
            pl.BlockSpec((C2, L, TH), lambda i, j: (0, 0, j)),
            pl.BlockSpec((1, TH), lambda i, j: (0, j)),
        ],
        out_specs=pl.BlockSpec((TB, TH), lambda i, j: (i, j)),
        compiler_params=pltpu.CompilerParams(
            dimension_semantics=("parallel", "parallel"),
            vmem_limit_bytes=32 * 1024 * 1024),
    )(e, taps, w3, b2)
    return out[:BT]


# ----------------------------------------------------------------------------
# Pallas kernel 2: prototype mean + euclidean distances + min-append
# ----------------------------------------------------------------------------
def proto_dist_kernel(sup_ref, q_ref, logits_ref):
    # sup: [Bb, N, K, Hp]   q: [Bb, Q, Hp]   logits: [Bb, Q, N+1]
    sup = sup_ref[...]
    q = q_ref[...]
    k_shots = sup.shape[2]
    proto = jnp.sum(sup, axis=2) * (1.0 / k_shots)               # [Bb, N, Hp]

    # -||q - p||^2 = 2 q.p - ||q||^2 - ||p||^2, all f32 (no bf16 cancellation)
    gram = jnp.einsum('bqh,bnh->bqn', q, proto,
                      preferred_element_type=jnp.float32)        # [Bb, Q, N]
    q2 = jnp.sum(q * q, axis=-1, keepdims=True)                  # [Bb, Q, 1]
    p2 = jnp.sum(proto * proto, axis=-1)[:, None, :]             # [Bb, 1, N]
    d = jnp.minimum(2.0 * gram - q2 - p2, 0.0)                   # true value <= 0

    minv = jnp.min(d, axis=-1, keepdims=True)                    # appended col = min-1
    logits_ref[...] = jnp.concatenate([d, minv - 1.0], axis=-1)  # single store


def proto_dist_pallas(sup_feat, q_feat):
    B, N, K, Hp = sup_feat.shape
    Q = q_feat.shape[1]
    # block several episodes per step; keep >=2 steps when B >= 2 (v7x megacore)
    Bb = max(1, min(8, pl.cdiv(B, 2)))
    Bp = _round_up(B, Bb)
    if Bp != B:
        sup_feat = jnp.pad(sup_feat, ((0, Bp - B), (0, 0), (0, 0), (0, 0)))
        q_feat = jnp.pad(q_feat, ((0, Bp - B), (0, 0), (0, 0)))
    logits = pl.pallas_call(
        proto_dist_kernel,
        out_shape=jax.ShapeDtypeStruct((Bp, Q, N + 1), jnp.float32),
        grid=(Bp // Bb,),
        in_specs=[
            pl.BlockSpec((Bb, N, K, Hp), lambda b: (b, 0, 0, 0)),
            pl.BlockSpec((Bb, Q, Hp), lambda b: (b, 0, 0)),
        ],
        out_specs=pl.BlockSpec((Bb, Q, N + 1), lambda b: (b, 0, 0)),
        compiler_params=pltpu.CompilerParams(
            dimension_semantics=("parallel",)),
    )(sup_feat, q_feat)
    return logits[:B]


# ----------------------------------------------------------------------------
# Glue (plain JAX): synthetic sentence encoder, entity pooling, layout plumbing
# ----------------------------------------------------------------------------
def encode(x, params):
    # x: [B, L_seq, D_in] -> (all_tokens [B, L_seq, H], sentence_emb [B, H])
    all_h = jnp.tanh(jnp.einsum('bld,dh->blh', x, params['enc_w']) + params['enc_b'])
    emb = jnp.mean(all_h, axis=1)
    return all_h, emb


def get_entity(x, eh, eh_end):
    # mean of token embeddings over span [eh, eh_end)
    # TODO(synk): PyTorch's IndexError fallback (clamping OOB positions to the last
    # token) is not replicated; synthetic spans are generated in-range.
    Lseq = x.shape[1]
    eh_end = jnp.where(eh >= eh_end, eh + 1, eh_end)
    pos = jnp.arange(Lseq)[None, :]
    mask = ((pos >= eh[:, None]) & (pos < eh_end[:, None])).astype(x.dtype)
    summed = jnp.einsum('bl,blh->bh', mask, x)
    cnt = jnp.sum(mask, axis=1, keepdims=True)
    return summed / cnt


def make_pool_mats(L):
    # concat([h(L), t(L)]) then AvgPool1d(2)  ==  h @ Ph + t @ Pt
    p = np.arange(L)[:, None]
    j = np.arange(L)[None, :]
    ph = ((p == 2 * j) | (p == 2 * j + 1)).astype(np.float32) * 0.5
    pt = (((p + L) == 2 * j) | ((p + L) == 2 * j + 1)).astype(np.float32) * 0.5
    return jnp.asarray(ph), jnp.asarray(pt)


def protonet_forward(params, support, query, N, K, total_Q, conv_num, conv_size):
    C, S = conv_num, conv_size

    all_sup, sup_emb = encode(support['x'], params)
    all_qry, qry_emb = encode(query['x'], params)
    H = sup_emb.shape[-1]
    L = H - S + 1

    sup_h = get_entity(all_sup, support['eh'], support['eh_end'])
    sup_t = get_entity(all_sup, support['et'], support['et_end'])
    qry_h = get_entity(all_qry, query['eh'], query['eh_end'])
    qry_t = get_entity(all_qry, query['et'], query['et_end'])

    Bs = sup_emb.shape[0]

    # merge support + query -> ONE feature_abstract launch
    emb = jnp.concatenate([sup_emb, qry_emb], axis=0)                  # [BT, H]
    head = jnp.concatenate([sup_h, qry_h], axis=0).reshape(-1, C, S)   # [BT, C, S]
    tail = jnp.concatenate([sup_t, qry_t], axis=0).reshape(-1, C, S)

    # compact activations (no 2C-/L-fold HBM replication):
    #   E[s, b, l]    = emb[b, l + s]
    #   taps[s, b, c] = head[b, c, s] (c < C) / tail[b, c - C, s] (c >= C)
    E = jnp.stack([emb[:, s:s + L] for s in range(S)], axis=0)         # [S, BT, L]
    taps = jnp.transpose(jnp.concatenate([head, tail], axis=1),
                         (2, 0, 1))                                    # [S, BT, 2C]

    # fold concat + AvgPool1d(2) into the fc weight (both linear, post-ReLU)
    ph, pt = make_pool_mats(L)
    w3fc = params['fc_w'].reshape(H, C, L).transpose(1, 2, 0)          # [C, L, H]
    wh = jnp.einsum('pl,clh->cph', ph, w3fc)                           # [C, L, H]
    wt = jnp.einsum('pl,clh->cph', pt, w3fc)
    w3 = jnp.concatenate([wh, wt], axis=0)                             # [2C, L, H]

    # lane-dense outputs: zero-pad H to a multiple of 128; padded feature
    # columns are exactly zero so pairwise distances are unchanged
    Hp = _round_up(H, 128)
    if Hp > 512:
        Hp = _round_up(Hp, 512)
    w3 = jnp.pad(w3, ((0, 0), (0, 0), (0, Hp - H))).astype(jnp.bfloat16)  # pre-cast
    b2 = jnp.pad(params['fc_b'], (0, Hp - H)).reshape(1, Hp)
    # NOTE: Dropout (drop_pool) is identity in eval mode; MaxPool1d is unused.

    feats = feature_abstract_pallas(E, taps, w3, b2)                   # [BT, Hp]

    B = Bs // (N * K)
    sup_feat = feats[:Bs].reshape(B, N, K, Hp)
    qry_feat = feats[Bs:].reshape(B, total_Q, Hp)

    logits = proto_dist_pallas(sup_feat, qry_feat)                     # [B, Q, N+1]
    # argmax in the wrapper (first-max tie-break, matching torch.max); avoids a
    # 1-lane masked store inside the kernel.
    pred = jnp.argmax(logits.reshape(-1, N + 1), axis=-1).astype(jnp.int32)
    return logits, pred


# ----------------------------------------------------------------------------
if __name__ == "__main__":
    key = jax.random.PRNGKey(0)
    B, N, K, total_Q = 2, 2, 2, 4
    L_seq, D_in = 16, 16
    conv_num, conv_size = 4, 8
    H = conv_num * conv_size            # hidden_size = 32
    L = H - conv_size + 1               # 25

    ks = jax.random.split(key, 20)
    params = {
        'enc_w': jax.random.normal(ks[0], (D_in, H), jnp.float32) * 0.1,
        'enc_b': jax.random.normal(ks[1], (H,), jnp.float32) * 0.1,
        'fc_w': jax.random.normal(ks[2], (H, conv_num * L), jnp.float32) * 0.1,
        'fc_b': jax.random.normal(ks[3], (H,), jnp.float32) * 0.1,
    }

    Bs = B * N * K
    Bq = B * total_Q

    def make_spans(k1, k2, n):
        start = jax.random.randint(k1, (n,), 0, L_seq - 3)
        length = jax.random.randint(k2, (n,), 0, 3)     # may be 0 -> eh_end == eh path
        return start, start + length

    support = {'x': jax.random.normal(ks[4], (Bs, L_seq, D_in), jnp.float32)}
    support['eh'], support['eh_end'] = make_spans(ks[5], ks[6], Bs)
    support['et'], support['et_end'] = make_spans(ks[7], ks[8], Bs)

    query = {'x': jax.random.normal(ks[9], (Bq, L_seq, D_in), jnp.float32)}
    query['eh'], query['eh_end'] = make_spans(ks[10], ks[11], Bq)
    query['et'], query['et_end'] = make_spans(ks[12], ks[13], Bq)

    logits, pred = protonet_forward(params, support, query, N, K, total_Q,
                                    conv_num, conv_size)
    logits = jax.block_until_ready(logits)
    pred = jax.block_until_ready(pred)

    assert logits.shape == (B, total_Q, N + 1), logits.shape
    assert pred.shape == (B * total_Q,), pred.shape
    assert bool(jnp.all(jnp.isfinite(logits))), "non-finite logits"
    print("KERNEL_OK")
</pallas_src>

<mosaic_0001>
module attributes {stable_mosaic.version = 11 : i64} {
  func.func @feature_abstract_kernel(%arg0: i32, %arg1: i32, %arg2: memref<8x8x25xf32, #tpu.memory_space<vmem>>, %arg3: memref<8x8x8xf32, #tpu.memory_space<vmem>>, %arg4: memref<8x25x128xbf16, #tpu.memory_space<vmem>>, %arg5: memref<1x128xf32, #tpu.memory_space<vmem>>, %arg6: memref<8x128xf32, #tpu.memory_space<vmem>>) attributes {dimension_semantics = [#tpu.dimension_semantics<parallel>, #tpu.dimension_semantics<parallel>], iteration_bounds = array<i64: 2, 1>, scalar_prefetch = 0 : i64, scratch_operands = 0 : i64, tpu.core_type = #tpu.core_type<tc>, window_params = [{transform_indices = @transform_0, window_bounds = array<i64: 8, 8, 25>}, {transform_indices = @transform_1, window_bounds = array<i64: 8, 8, 8>}, {transform_indices = @transform_2, window_bounds = array<i64: 8, 25, 128>}, {transform_indices = @transform_3, window_bounds = array<i64: 1, 128>}, {transform_indices = @transform_4, window_bounds = array<i64: 8, 128>}]} {
    %c0 = arith.constant 0 : index
    %c0_0 = arith.constant 0 : index
    %c0_1 = arith.constant 0 : index
    %0 = vector.load %arg2[%c0, %c0_0, %c0_1] : memref<8x8x25xf32, #tpu.memory_space<vmem>>, vector<1x8x25xf32>
    %1 = vector.shape_cast %0 : vector<1x8x25xf32> to vector<8x25xf32>
    %c1 = arith.constant 1 : index
    %c0_2 = arith.constant 0 : index
    %c0_3 = arith.constant 0 : index
    %2 = vector.load %arg2[%c1, %c0_2, %c0_3] : memref<8x8x25xf32, #tpu.memory_space<vmem>>, vector<1x8x25xf32>
    %3 = vector.shape_cast %2 : vector<1x8x25xf32> to vector<8x25xf32>
    %c2 = arith.constant 2 : index
    %c0_4 = arith.constant 0 : index
    %c0_5 = arith.constant 0 : index
    %4 = vector.load %arg2[%c2, %c0_4, %c0_5] : memref<8x8x25xf32, #tpu.memory_space<vmem>>, vector<1x8x25xf32>
    %5 = vector.shape_cast %4 : vector<1x8x25xf32> to vector<8x25xf32>
    %c3 = arith.constant 3 : index
    %c0_6 = arith.constant 0 : index
    %c0_7 = arith.constant 0 : index
    %6 = vector.load %arg2[%c3, %c0_6, %c0_7] : memref<8x8x25xf32, #tpu.memory_space<vmem>>, vector<1x8x25xf32>
    %7 = vector.shape_cast %6 : vector<1x8x25xf32> to vector<8x25xf32>
    %c4 = arith.constant 4 : index
    %c0_8 = arith.constant 0 : index
    %c0_9 = arith.constant 0 : index
    %8 = vector.load %arg2[%c4, %c0_8, %c0_9] : memref<8x8x25xf32, #tpu.memory_space<vmem>>, vector<1x8x25xf32>
    %9 = vector.shape_cast %8 : vector<1x8x25xf32> to vector<8x25xf32>
    %c5 = arith.constant 5 : index
    %c0_10 = arith.constant 0 : index
    %c0_11 = arith.constant 0 : index
    %10 = vector.load %arg2[%c5, %c0_10, %c0_11] : memref<8x8x25xf32, #tpu.memory_space<vmem>>, vector<1x8x25xf32>
    %11 = vector.shape_cast %10 : vector<1x8x25xf32> to vector<8x25xf32>
    %c6 = arith.constant 6 : index
    %c0_12 = arith.constant 0 : index
    %c0_13 = arith.constant 0 : index
    %12 = vector.load %arg2[%c6, %c0_12, %c0_13] : memref<8x8x25xf32, #tpu.memory_space<vmem>>, vector<1x8x25xf32>
    %13 = vector.shape_cast %12 : vector<1x8x25xf32> to vector<8x25xf32>
    %c7 = arith.constant 7 : index
    %c0_14 = arith.constant 0 : index
    %c0_15 = arith.constant 0 : index
    %14 = vector.load %arg2[%c7, %c0_14, %c0_15] : memref<8x8x25xf32, #tpu.memory_space<vmem>>, vector<1x8x25xf32>
    %15 = vector.shape_cast %14 : vector<1x8x25xf32> to vector<8x25xf32>
    %c0_16 = arith.constant 0 : index
    %c0_17 = arith.constant 0 : index
    %c0_18 = arith.constant 0 : index
    %16 = vector.load %arg3[%c0_16, %c0_17, %c0_18] : memref<8x8x8xf32, #tpu.memory_space<vmem>>, vector<1x8x8xf32>
    %17 = vector.shape_cast %16 : vector<1x8x8xf32> to vector<8x8xf32>
    %c1_19 = arith.constant 1 : index
    %c0_20 = arith.constant 0 : index
    %c0_21 = arith.constant 0 : index
    %18 = vector.load %arg3[%c1_19, %c0_20, %c0_21] : memref<8x8x8xf32, #tpu.memory_space<vmem>>, vector<1x8x8xf32>
    %19 = vector.shape_cast %18 : vector<1x8x8xf32> to vector<8x8xf32>
    %c2_22 = arith.constant 2 : index
    %c0_23 = arith.constant 0 : index
    %c0_24 = arith.constant 0 : index
    %20 = vector.load %arg3[%c2_22, %c0_23, %c0_24] : memref<8x8x8xf32, #tpu.memory_space<vmem>>, vector<1x8x8xf32>
    %21 = vector.shape_cast %20 : vector<1x8x8xf32> to vector<8x8xf32>
    %c3_25 = arith.constant 3 : index
    %c0_26 = arith.constant 0 : index
    %c0_27 = arith.constant 0 : index
    %22 = vector.load %arg3[%c3_25, %c0_26, %c0_27] : memref<8x8x8xf32, #tpu.memory_space<vmem>>, vector<1x8x8xf32>
    %23 = vector.shape_cast %22 : vector<1x8x8xf32> to vector<8x8xf32>
    %c4_28 = arith.constant 4 : index
    %c0_29 = arith.constant 0 : index
    %c0_30 = arith.constant 0 : index
    %24 = vector.load %arg3[%c4_28, %c0_29, %c0_30] : memref<8x8x8xf32, #tpu.memory_space<vmem>>, vector<1x8x8xf32>
    %25 = vector.shape_cast %24 : vector<1x8x8xf32> to vector<8x8xf32>
    %c5_31 = arith.constant 5 : index
    %c0_32 = arith.constant 0 : index
    %c0_33 = arith.constant 0 : index
    %26 = vector.load %arg3[%c5_31, %c0_32, %c0_33] : memref<8x8x8xf32, #tpu.memory_space<vmem>>, vector<1x8x8xf32>
    %27 = vector.shape_cast %26 : vector<1x8x8xf32> to vector<8x8xf32>
    %c6_34 = arith.constant 6 : index
    %c0_35 = arith.constant 0 : index
    %c0_36 = arith.constant 0 : index
    %28 = vector.load %arg3[%c6_34, %c0_35, %c0_36] : memref<8x8x8xf32, #tpu.memory_space<vmem>>, vector<1x8x8xf32>
    %29 = vector.shape_cast %28 : vector<1x8x8xf32> to vector<8x8xf32>
    %c7_37 = arith.constant 7 : index
    %c0_38 = arith.constant 0 : index
    %c0_39 = arith.constant 0 : index
    %30 = vector.load %arg3[%c7_37, %c0_38, %c0_39] : memref<8x8x8xf32, #tpu.memory_space<vmem>>, vector<1x8x8xf32>
    %31 = vector.shape_cast %30 : vector<1x8x8xf32> to vector<8x8xf32>
    %cst = arith.constant 0.000000e+00 : f32
    %32 = vector.broadcast %cst : f32 to vector<8x128xf32>
    %33 = vector.extract_strided_slice %17 {offsets = [0, 0], sizes = [8, 1], strides = [1, 1]} : vector<8x8xf32> to vector<8x1xf32>
    %34 = vector.broadcast %33 : vector<8x1xf32> to vector<8x25xf32>
    %35 = arith.mulf %34, %1 : vector<8x25xf32>
    %36 = vector.extract_strided_slice %19 {offsets = [0, 0], sizes = [8, 1], strides = [1, 1]} : vector<8x8xf32> to vector<8x1xf32>
    %37 = vector.broadcast %36 : vector<8x1xf32> to vector<8x25xf32>
    %38 = arith.mulf %37, %3 : vector<8x25xf32>
    %39 = arith.addf %35, %38 : vector<8x25xf32>
    %40 = vector.extract_strided_slice %21 {offsets = [0, 0], sizes = [8, 1], strides = [1, 1]} : vector<8x8xf32> to vector<8x1xf32>
    %41 = vector.broadcast %40 : vector<8x1xf32> to vector<8x25xf32>
    %42 = arith.mulf %41, %5 : vector<8x25xf32>
    %43 = arith.addf %39, %42 : vector<8x25xf32>
    %44 = vector.extract_strided_slice %23 {offsets = [0, 0], sizes = [8, 1], strides = [1, 1]} : vector<8x8xf32> to vector<8x1xf32>
    %45 = vector.broadcast %44 : vector<8x1xf32> to vector<8x25xf32>
    %46 = arith.mulf %45, %7 : vector<8x25xf32>
    %47 = arith.addf %43, %46 : vector<8x25xf32>
    %48 = vector.extract_strided_slice %25 {offsets = [0, 0], sizes = [8, 1], strides = [1, 1]} : vector<8x8xf32> to vector<8x1xf32>
    %49 = vector.broadcast %48 : vector<8x1xf32> to vector<8x25xf32>
    %50 = arith.mulf %49, %9 : vector<8x25xf32>
    %51 = arith.addf %47, %50 : vector<8x25xf32>
    %52 = vector.extract_strided_slice %27 {offsets = [0, 0], sizes = [8, 1], strides = [1, 1]} : vector<8x8xf32> to vector<8x1xf32>
    %53 = vector.broadcast %52 : vector<8x1xf32> to vector<8x25xf32>
    %54 = arith.mulf %53, %11 : vector<8x25xf32>
    %55 = arith.addf %51, %54 : vector<8x25xf32>
    %56 = vector.extract_strided_slice %29 {offsets = [0, 0], sizes = [8, 1], strides = [1, 1]} : vector<8x8xf32> to vector<8x1xf32>
    %57 = vector.broadcast %56 : vector<8x1xf32> to vector<8x25xf32>
    %58 = arith.mulf %57, %13 : vector<8x25xf32>
    %59 = arith.addf %55, %58 : vector<8x25xf32>
    %60 = vector.extract_strided_slice %31 {offsets = [0, 0], sizes = [8, 1], strides = [1, 1]} : vector<8x8xf32> to vector<8x1xf32>
    %61 = vector.broadcast %60 : vector<8x1xf32> to vector<8x25xf32>
    %62 = arith.mulf %61, %15 : vector<8x25xf32>
    %63 = arith.addf %59, %62 : vector<8x25xf32>
    %cst_40 = arith.constant 0.000000e+00 : f32
    %64 = vector.broadcast %cst_40 : f32 to vector<8x25xf32>
    %65 = arith.maximumf %63, %64 : vector<8x25xf32>
    %66 = arith.truncf %65 : vector<8x25xf32> to vector<8x25xbf16>
    %c0_41 = arith.constant 0 : index
    %c0_42 = arith.constant 0 : index
    %c0_43 = arith.constant 0 : index
    %67 = vector.load %arg4[%c0_41, %c0_42, %c0_43] : memref<8x25x128xbf16, #tpu.memory_space<vmem>>, vector<1x25x128xbf16>
    %68 = vector.shape_cast %67 : vector<1x25x128xbf16> to vector<25x128xbf16>
    %cst_44 = arith.constant dense<0.000000e+00> : vector<8x128xf32>
    %69 = tpu.matmul %66, %68, %cst_44 {dimension_numbers = #tpu.dot_dimension_numbers<[1], [0], [0], [1], [0, 0, 1, 1], [], []>} : vector<8x25xbf16>, vector<25x128xbf16>, vector<8x128xf32> -> vector<8x128xf32>
    %70 = arith.addf %32, %69 : vector<8x128xf32>
    %71 = vector.extract_strided_slice %17 {offsets = [0, 1], sizes = [8, 1], strides = [1, 1]} : vector<8x8xf32> to vector<8x1xf32>
    %72 = vector.broadcast %71 : vector<8x1xf32> to vector<8x25xf32>
    %73 = arith.mulf %72, %1 : vector<8x25xf32>
    %74 = vector.extract_strided_slice %19 {offsets = [0, 1], sizes = [8, 1], strides = [1, 1]} : vector<8x8xf32> to vector<8x1xf32>
    %75 = vector.broadcast %74 : vector<8x1xf32> to vector<8x25xf32>
    %76 = arith.mulf %75, %3 : vector<8x25xf32>
    %77 = arith.addf %73, %76 : vector<8x25xf32>
    %78 = vector.extract_strided_slice %21 {offsets = [0, 1], sizes = [8, 1], strides = [1, 1]} : vector<8x8xf32> to vector<8x1xf32>
    %79 = vector.broadcast %78 : vector<8x1xf32> to vector<8x25xf32>
    %80 = arith.mulf %79, %5 : vector<8x25xf32>
    %81 = arith.addf %77, %80 : vector<8x25xf32>
    %82 = vector.extract_strided_slice %23 {offsets = [0, 1], sizes = [8, 1], strides = [1, 1]} : vector<8x8xf32> to vector<8x1xf32>
    %83 = vector.broadcast %82 : vector<8x1xf32> to vector<8x25xf32>
    %84 = arith.mulf %83, %7 : vector<8x25xf32>
    %85 = arith.addf %81, %84 : vector<8x25xf32>
    %86 = vector.extract_strided_slice %25 {offsets = [0, 1], sizes = [8, 1], strides = [1, 1]} : vector<8x8xf32> to vector<8x1xf32>
    %87 = vector.broadcast %86 : vector<8x1xf32> to vector<8x25xf32>
    %88 = arith.mulf %87, %9 : vector<8x25xf32>
    %89 = arith.addf %85, %88 : vector<8x25xf32>
    %90 = vector.extract_strided_slice %27 {offsets = [0, 1], sizes = [8, 1], strides = [1, 1]} : vector<8x8xf32> to vector<8x1xf32>
    %91 = vector.broadcast %90 : vector<8x1xf32> to vector<8x25xf32>
    %92 = arith.mulf %91, %11 : vector<8x25xf32>
    %93 = arith.addf %89, %92 : vector<8x25xf32>
    %94 = vector.extract_strided_slice %29 {offsets = [0, 1], sizes = [8, 1], strides = [1, 1]} : vector<8x8xf32> to vector<8x1xf32>
    %95 = vector.broadcast %94 : vector<8x1xf32> to vector<8x25xf32>
    %96 = arith.mulf %95, %13 : vector<8x25xf32>
    %97 = arith.addf %93, %96 : vector<8x25xf32>
    %98 = vector.extract_strided_slice %31 {offsets = [0, 1], sizes = [8, 1], strides = [1, 1]} : vector<8x8xf32> to vector<8x1xf32>
    %99 = vector.broadcast %98 : vector<8x1xf32> to vector<8x25xf32>
    %100 = arith.mulf %99, %15 : vector<8x25xf32>
    %101 = arith.addf %97, %100 : vector<8x25xf32>
    %cst_45 = arith.constant 0.000000e+00 : f32
    %102 = vector.broadcast %cst_45 : f32 to vector<8x25xf32>
    %103 = arith.maximumf %101, %102 : vector<8x25xf32>
    %104 = arith.truncf %103 : vector<8x25xf32> to vector<8x25xbf16>
    %c1_46 = arith.constant 1 : index
    %c0_47 = arith.constant 0 : index
    %c0_48 = arith.constant 0 : index
    %105 = vector.load %arg4[%c1_46, %c0_47, %c0_48] : memref<8x25x128xbf16, #tpu.memory_space<vmem>>, vector<1x25x128xbf16>
    %106 = vector.shape_cast %105 : vector<1x25x128xbf16> to vector<25x128xbf16>
    %cst_49 = arith.constant dense<0.000000e+00> : vector<8x128xf32>
    %107 = tpu.matmul %104, %106, %cst_49 {dimension_numbers = #tpu.dot_dimension_numbers<[1], [0], [0], [1], [0, 0, 1, 1], [], []>} : vector<8x25xbf16>, vector<25x128xbf16>, vector<8x128xf32> -> vector<8x128xf32>
    %108 = arith.addf %70, %107 : vector<8x128xf32>
    %109 = vector.extract_strided_slice %17 {offsets = [0, 2], sizes = [8, 1], strides = [1, 1]} : vector<8x8xf32> to vector<8x1xf32>
    %110 = vector.broadcast %109 : vector<8x1xf32> to vector<8x25xf32>
    %111 = arith.mulf %110, %1 : vector<8x25xf32>
    %112 = vector.extract_strided_slice %19 {offsets = [0, 2], sizes = [8, 1], strides = [1, 1]} : vector<8x8xf32> to vector<8x1xf32>
    %113 = vector.broadcast %112 : vector<8x1xf32> to vector<8x25xf32>
    %114 = arith.mulf %113, %3 : vector<8x25xf32>
    %115 = arith.addf %111, %114 : vector<8x25xf32>
    %116 = vector.extract_strided_slice %21 {offsets = [0, 2], sizes = [8, 1], strides = [1, 1]} : vector<8x8xf32> to vector<8x1xf32>
    %117 = vector.broadcast %116 : vector<8x1xf32> to vector<8x25xf32>
    %118 = arith.mulf %117, %5 : vector<8x25xf32>
    %119 = arith.addf %115, %118 : vector<8x25xf32>
    %120 = vector.extract_strided_slice %23 {offsets = [0, 2], sizes = [8, 1], strides = [1, 1]} : vector<8x8xf32> to vector<8x1xf32>
    %121 = vector.broadcast %120 : vector<8x1xf32> to vector<8x25xf32>
    %122 = arith.mulf %121, %7 : vector<8x25xf32>
    %123 = arith.addf %119, %122 : vector<8x25xf32>
    %124 = vector.extract_strided_slice %25 {offsets = [0, 2], sizes = [8, 1], strides = [1, 1]} : vector<8x8xf32> to vector<8x1xf32>
    %125 = vector.broadcast %124 : vector<8x1xf32> to vector<8x25xf32>
    %126 = arith.mulf %125, %9 : vector<8x25xf32>
    %127 = arith.addf %123, %126 : vector<8x25xf32>
    %128 = vector.extract_strided_slice %27 {offsets = [0, 2], sizes = [8, 1], strides = [1, 1]} : vector<8x8xf32> to vector<8x1xf32>
    %129 = vector.broadcast %128 : vector<8x1xf32> to vector<8x25xf32>
    %130 = arith.mulf %129, %11 : vector<8x25xf32>
    %131 = arith.addf %127, %130 : vector<8x25xf32>
    %132 = vector.extract_strided_slice %29 {offsets = [0, 2], sizes = [8, 1], strides = [1, 1]} : vector<8x8xf32> to vector<8x1xf32>
    %133 = vector.broadcast %132 : vector<8x1xf32> to vector<8x25xf32>
    %134 = arith.mulf %133, %13 : vector<8x25xf32>
    %135 = arith.addf %131, %134 : vector<8x25xf32>
    %136 = vector.extract_strided_slice %31 {offsets = [0, 2], sizes = [8, 1], strides = [1, 1]} : vector<8x8xf32> to vector<8x1xf32>
    %137 = vector.broadcast %136 : vector<8x1xf32> to vector<8x25xf32>
    %138 = arith.mulf %137, %15 : vector<8x25xf32>
    %139 = arith.addf %135, %138 : vector<8x25xf32>
    %cst_50 = arith.constant 0.000000e+00 : f32
    %140 = vector.broadcast %cst_50 : f32 to vector<8x25xf32>
    %141 = arith.maximumf %139, %140 : vector<8x25xf32>
    %142 = arith.truncf %141 : vector<8x25xf32> to vector<8x25xbf16>
    %c2_51 = arith.constant 2 : index
    %c0_52 = arith.constant 0 : index
    %c0_53 = arith.constant 0 : index
    %143 = vector.load %arg4[%c2_51, %c0_52, %c0_53] : memref<8x25x128xbf16, #tpu.memory_space<vmem>>, vector<1x25x128xbf16>
    %144 = vector.shape_cast %143 : vector<1x25x128xbf16> to vector<25x128xbf16>
    %cst_54 = arith.constant dense<0.000000e+00> : vector<8x128xf32>
    %145 = tpu.matmul %142, %144, %cst_54 {dimension_numbers = #tpu.dot_dimension_numbers<[1], [0], [0], [1], [0, 0, 1, 1], [], []>} : vector<8x25xbf16>, vector<25x128xbf16>, vector<8x128xf32> -> vector<8x128xf32>
    %146 = arith.addf %108, %145 : vector<8x128xf32>
    %147 = vector.extract_strided_slice %17 {offsets = [0, 3], sizes = [8, 1], strides = [1, 1]} : vector<8x8xf32> to vector<8x1xf32>
    %148 = vector.broadcast %147 : vector<8x1xf32> to vector<8x25xf32>
    %149 = arith.mulf %148, %1 : vector<8x25xf32>
    %150 = vector.extract_strided_slice %19 {offsets = [0, 3], sizes = [8, 1], strides = [1, 1]} : vector<8x8xf32> to vector<8x1xf32>
    %151 = vector.broadcast %150 : vector<8x1xf32> to vector<8x25xf32>
    %152 = arith.mulf %151, %3 : vector<8x25xf32>
    %153 = arith.addf %149, %152 : vector<8x25xf32>
    %154 = vector.extract_strided_slice %21 {offsets = [0, 3], sizes = [8, 1], strides = [1, 1]} : vector<8x8xf32> to vector<8x1xf32>
    %155 = vector.broadcast %154 : vector<8x1xf32> to vector<8x25xf32>
    %156 = arith.mulf %155, %5 : vector<8x25xf32>
    %157 = arith.addf %153, %156 : vector<8x25xf32>
    %158 = vector.extract_strided_slice %23 {offsets = [0, 3], sizes = [8, 1], strides = [1, 1]} : vector<8x8xf32> to vector<8x1xf32>
    %159 = vector.broadcast %158 : vector<8x1xf32> to vector<8x25xf32>
    %160 = arith.mulf %159, %7 : vector<8x25xf32>
    %161 = arith.addf %157, %160 : vector<8x25xf32>
    %162 = vector.extract_strided_slice %25 {offsets = [0, 3], sizes = [8, 1], strides = [1, 1]} : vector<8x8xf32> to vector<8x1xf32>
    %163 = vector.broadcast %162 : vector<8x1xf32> to vector<8x25xf32>
    %164 = arith.mulf %163, %9 : vector<8x25xf32>
    %165 = arith.addf %161, %164 : vector<8x25xf32>
    %166 = vector.extract_strided_slice %27 {offsets = [0, 3], sizes = [8, 1], strides = [1, 1]} : vector<8x8xf32> to vector<8x1xf32>
    %167 = vector.broadcast %166 : vector<8x1xf32> to vector<8x25xf32>
    %168 = arith.mulf %167, %11 : vector<8x25xf32>
    %169 = arith.addf %165, %168 : vector<8x25xf32>
    %170 = vector.extract_strided_slice %29 {offsets = [0, 3], sizes = [8, 1], strides = [1, 1]} : vector<8x8xf32> to vector<8x1xf32>
    %171 = vector.broadcast %170 : vector<8x1xf32> to vector<8x25xf32>
    %172 = arith.mulf %171, %13 : vector<8x25xf32>
    %173 = arith.addf %169, %172 : vector<8x25xf32>
    %174 = vector.extract_strided_slice %31 {offsets = [0, 3], sizes = [8, 1], strides = [1, 1]} : vector<8x8xf32> to vector<8x1xf32>
    %175 = vector.broadcast %174 : vector<8x1xf32> to vector<8x25xf32>
    %176 = arith.mulf %175, %15 : vector<8x25xf32>
    %177 = arith.addf %173, %176 : vector<8x25xf32>
    %cst_55 = arith.constant 0.000000e+00 : f32
    %178 = vector.broadcast %cst_55 : f32 to vector<8x25xf32>
    %179 = arith.maximumf %177, %178 : vector<8x25xf32>
    %180 = arith.truncf %179 : vector<8x25xf32> to vector<8x25xbf16>
    %c3_56 = arith.constant 3 : index
    %c0_57 = arith.constant 0 : index
    %c0_58 = arith.constant 0 : index
    %181 = vector.load %arg4[%c3_56, %c0_57, %c0_58] : memref<8x25x128xbf16, #tpu.memory_space<vmem>>, vector<1x25x128xbf16>
    %182 = vector.shape_cast %181 : vector<1x25x128xbf16> to vector<25x128xbf16>
    %cst_59 = arith.constant dense<0.000000e+00> : vector<8x128xf32>
    %183 = tpu.matmul %180, %182, %cst_59 {dimension_numbers = #tpu.dot_dimension_numbers<[1], [0], [0], [1], [0, 0, 1, 1], [], []>} : vector<8x25xbf16>, vector<25x128xbf16>, vector<8x128xf32> -> vector<8x128xf32>
    %184 = arith.addf %146, %183 : vector<8x128xf32>
    %185 = vector.extract_strided_slice %17 {offsets = [0, 4], sizes = [8, 1], strides = [1, 1]} : vector<8x8xf32> to vector<8x1xf32>
    %186 = vector.broadcast %185 : vector<8x1xf32> to vector<8x25xf32>
    %187 = arith.mulf %186, %1 : vector<8x25xf32>
    %188 = vector.extract_strided_slice %19 {offsets = [0, 4], sizes = [8, 1], strides = [1, 1]} : vector<8x8xf32> to vector<8x1xf32>
    %189 = vector.broadcast %188 : vector<8x1xf32> to vector<8x25xf32>
    %190 = arith.mulf %189, %3 : vector<8x25xf32>
    %191 = arith.addf %187, %190 : vector<8x25xf32>
    %192 = vector.extract_strided_slice %21 {offsets = [0, 4], sizes = [8, 1], strides = [1, 1]} : vector<8x8xf32> to vector<8x1xf32>
    %193 = vector.broadcast %192 : vector<8x1xf32> to vector<8x25xf32>
    %194 = arith.mulf %193, %5 : vector<8x25xf32>
    %195 = arith.addf %191, %194 : vector<8x25xf32>
    %196 = vector.extract_strided_slice %23 {offsets = [0, 4], sizes = [8, 1], strides = [1, 1]} : vector<8x8xf32> to vector<8x1xf32>
    %197 = vector.broadcast %196 : vector<8x1xf32> to vector<8x25xf32>
    %198 = arith.mulf %197, %7 : vector<8x25xf32>
    %199 = arith.addf %195, %198 : vector<8x25xf32>
    %200 = vector.extract_strided_slice %25 {offsets = [0, 4], sizes = [8, 1], strides = [1, 1]} : vector<8x8xf32> to vector<8x1xf32>
    %201 = vector.broadcast %200 : vector<8x1xf32> to vector<8x25xf32>
    %202 = arith.mulf %201, %9 : vector<8x25xf32>
    %203 = arith.addf %199, %202 : vector<8x25xf32>
    %204 = vector.extract_strided_slice %27 {offsets = [0, 4], sizes = [8, 1], strides = [1, 1]} : vector<8x8xf32> to vector<8x1xf32>
    %205 = vector.broadcast %204 : vector<8x1xf32> to vector<8x25xf32>
    %206 = arith.mulf %205, %11 : vector<8x25xf32>
    %207 = arith.addf %203, %206 : vector<8x25xf32>
    %208 = vector.extract_strided_slice %29 {offsets = [0, 4], sizes = [8, 1], strides = [1, 1]} : vector<8x8xf32> to vector<8x1xf32>
    %209 = vector.broadcast %208 : vector<8x1xf32> to vector<8x25xf32>
    %210 = arith.mulf %209, %13 : vector<8x25xf32>
    %211 = arith.addf %207, %210 : vector<8x25xf32>
    %212 = vector.extract_strided_slice %31 {offsets = [0, 4], sizes = [8, 1], strides = [1, 1]} : vector<8x8xf32> to vector<8x1xf32>
    %213 = vector.broadcast %212 : vector<8x1xf32> to vector<8x25xf32>
    %214 = arith.mulf %213, %15 : vector<8x25xf32>
    %215 = arith.addf %211, %214 : vector<8x25xf32>
    %cst_60 = arith.constant 0.000000e+00 : f32
    %216 = vector.broadcast %cst_60 : f32 to vector<8x25xf32>
    %217 = arith.maximumf %215, %216 : vector<8x25xf32>
    %218 = arith.truncf %217 : vector<8x25xf32> to vector<8x25xbf16>
    %c4_61 = arith.constant 4 : index
    %c0_62 = arith.constant 0 : index
    %c0_63 = arith.constant 0 : index
    %219 = vector.load %arg4[%c4_61, %c0_62, %c0_63] : memref<8x25x128xbf16, #tpu.memory_space<vmem>>, vector<1x25x128xbf16>
    %220 = vector.shape_cast %219 : vector<1x25x128xbf16> to vector<25x128xbf16>
    %cst_64 = arith.constant dense<0.000000e+00> : vector<8x128xf32>
    %221 = tpu.matmul %218, %220, %cst_64 {dimension_numbers = #tpu.dot_dimension_numbers<[1], [0], [0], [1], [0, 0, 1, 1], [], []>} : vector<8x25xbf16>, vector<25x128xbf16>, vector<8x128xf32> -> vector<8x128xf32>
    %222 = arith.addf %184, %221 : vector<8x128xf32>
    %223 = vector.extract_strided_slice %17 {offsets = [0, 5], sizes = [8, 1], strides = [1, 1]} : vector<8x8xf32> to vector<8x1xf32>
    %224 = vector.broadcast %223 : vector<8x1xf32> to vector<8x25xf32>
    %225 = arith.mulf %224, %1 : vector<8x25xf32>
    %226 = vector.extract_strided_slice %19 {offsets = [0, 5], sizes = [8, 1], strides = [1, 1]} : vector<8x8xf32> to vector<8x1xf32>
    %227 = vector.broadcast %226 : vector<8x1xf32> to vector<8x25xf32>
    %228 = arith.mulf %227, %3 : vector<8x25xf32>
    %229 = arith.addf %225, %228 : vector<8x25xf32>
    %230 = vector.extract_strided_slice %21 {offsets = [0, 5], sizes = [8, 1], strides = [1, 1]} : vector<8x8xf32> to vector<8x1xf32>
    %231 = vector.broadcast %230 : vector<8x1xf32> to vector<8x25xf32>
    %232 = arith.mulf %231, %5 : vector<8x25xf32>
    %233 = arith.addf %229, %232 : vector<8x25xf32>
    %234 = vector.extract_strided_slice %23 {offsets = [0, 5], sizes = [8, 1], strides = [1, 1]} : vector<8x8xf32> to vector<8x1xf32>
    %235 = vector.broadcast %234 : vector<8x1xf32> to vector<8x25xf32>
    %236 = arith.mulf %235, %7 : vector<8x25xf32>
    %237 = arith.addf %233, %236 : vector<8x25xf32>
    %238 = vector.extract_strided_slice %25 {offsets = [0, 5], sizes = [8, 1], strides = [1, 1]} : vector<8x8xf32> to vector<8x1xf32>
    %239 = vector.broadcast %238 : vector<8x1xf32> to vector<8x25xf32>
    %240 = arith.mulf %239, %9 : vector<8x25xf32>
    %241 = arith.addf %237, %240 : vector<8x25xf32>
    %242 = vector.extract_strided_slice %27 {offsets = [0, 5], sizes = [8, 1], strides = [1, 1]} : vector<8x8xf32> to vector<8x1xf32>
    %243 = vector.broadcast %242 : vector<8x1xf32> to vector<8x25xf32>
    %244 = arith.mulf %243, %11 : vector<8x25xf32>
    %245 = arith.addf %241, %244 : vector<8x25xf32>
    %246 = vector.extract_strided_slice %29 {offsets = [0, 5], sizes = [8, 1], strides = [1, 1]} : vector<8x8xf32> to vector<8x1xf32>
    %247 = vector.broadcast %246 : vector<8x1xf32> to vector<8x25xf32>
    %248 = arith.mulf %247, %13 : vector<8x25xf32>
    %249 = arith.addf %245, %248 : vector<8x25xf32>
    %250 = vector.extract_strided_slice %31 {offsets = [0, 5], sizes = [8, 1], strides = [1, 1]} : vector<8x8xf32> to vector<8x1xf32>
    %251 = vector.broadcast %250 : vector<8x1xf32> to vector<8x25xf32>
    %252 = arith.mulf %251, %15 : vector<8x25xf32>
    %253 = arith.addf %249, %252 : vector<8x25xf32>
    %cst_65 = arith.constant 0.000000e+00 : f32
    %254 = vector.broadcast %cst_65 : f32 to vector<8x25xf32>
    %255 = arith.maximumf %253, %254 : vector<8x25xf32>
    %256 = arith.truncf %255 : vector<8x25xf32> to vector<8x25xbf16>
    %c5_66 = arith.constant 5 : index
    %c0_67 = arith.constant 0 : index
    %c0_68 = arith.constant 0 : index
    %257 = vector.load %arg4[%c5_66, %c0_67, %c0_68] : memref<8x25x128xbf16, #tpu.memory_space<vmem>>, vector<1x25x128xbf16>
    %258 = vector.shape_cast %257 : vector<1x25x128xbf16> to vector<25x128xbf16>
    %cst_69 = arith.constant dense<0.000000e+00> : vector<8x128xf32>
    %259 = tpu.matmul %256, %258, %cst_69 {dimension_numbers = #tpu.dot_dimension_numbers<[1], [0], [0], [1], [0, 0, 1, 1], [], []>} : vector<8x25xbf16>, vector<25x128xbf16>, vector<8x128xf32> -> vector<8x128xf32>
    %260 = arith.addf %222, %259 : vector<8x128xf32>
    %261 = vector.extract_strided_slice %17 {offsets = [0, 6], sizes = [8, 1], strides = [1, 1]} : vector<8x8xf32> to vector<8x1xf32>
    %262 = vector.broadcast %261 : vector<8x1xf32> to vector<8x25xf32>
    %263 = arith.mulf %262, %1 : vector<8x25xf32>
    %264 = vector.extract_strided_slice %19 {offsets = [0, 6], sizes = [8, 1], strides = [1, 1]} : vector<8x8xf32> to vector<8x1xf32>
    %265 = vector.broadcast %264 : vector<8x1xf32> to vector<8x25xf32>
    %266 = arith.mulf %265, %3 : vector<8x25xf32>
    %267 = arith.addf %263, %266 : vector<8x25xf32>
    %268 = vector.extract_strided_slice %21 {offsets = [0, 6], sizes = [8, 1], strides = [1, 1]} : vector<8x8xf32> to vector<8x1xf32>
    %269 = vector.broadcast %268 : vector<8x1xf32> to vector<8x25xf32>
    %270 = arith.mulf %269, %5 : vector<8x25xf32>
    %271 = arith.addf %267, %270 : vector<8x25xf32>
    %272 = vector.extract_strided_slice %23 {offsets = [0, 6], sizes = [8, 1], strides = [1, 1]} : vector<8x8xf32> to vector<8x1xf32>
    %273 = vector.broadcast %272 : vector<8x1xf32> to vector<8x25xf32>
    %274 = arith.mulf %273, %7 : vector<8x25xf32>
    %275 = arith.addf %271, %274 : vector<8x25xf32>
    %276 = vector.extract_strided_slice %25 {offsets = [0, 6], sizes = [8, 1], strides = [1, 1]} : vector<8x8xf32> to vector<8x1xf32>
    %277 = vector.broadcast %276 : vector<8x1xf32> to vector<8x25xf32>
    %278 = arith.mulf %277, %9 : vector<8x25xf32>
    %279 = arith.addf %275, %278 : vector<8x25xf32>
    %280 = vector.extract_strided_slice %27 {offsets = [0, 6], sizes = [8, 1], strides = [1, 1]} : vector<8x8xf32> to vector<8x1xf32>
    %281 = vector.broadcast %280 : vector<8x1xf32> to vector<8x25xf32>
    %282 = arith.mulf %281, %11 : vector<8x25xf32>
    %283 = arith.addf %279, %282 : vector<8x25xf32>
    %284 = vector.extract_strided_slice %29 {offsets = [0, 6], sizes = [8, 1], strides = [1, 1]} : vector<8x8xf32> to vector<8x1xf32>
    %285 = vector.broadcast %284 : vector<8x1xf32> to vector<8x25xf32>
    %286 = arith.mulf %285, %13 : vector<8x25xf32>
    %287 = arith.addf %283, %286 : vector<8x25xf32>
    %288 = vector.extract_strided_slice %31 {offsets = [0, 6], sizes = [8, 1], strides = [1, 1]} : vector<8x8xf32> to vector<8x1xf32>
    %289 = vector.broadcast %288 : vector<8x1xf32> to vector<8x25xf32>
    %290 = arith.mulf %289, %15 : vector<8x25xf32>
    %291 = arith.addf %287, %290 : vector<8x25xf32>
    %cst_70 = arith.constant 0.000000e+00 : f32
    %292 = vector.broadcast %cst_70 : f32 to vector<8x25xf32>
    %293 = arith.maximumf %291, %292 : vector<8x25xf32>
    %294 = arith.truncf %293 : vector<8x25xf32> to vector<8x25xbf16>
    %c6_71 = arith.constant 6 : index
    %c0_72 = arith.constant 0 : index
    %c0_73 = arith.constant 0 : index
    %295 = vector.load %arg4[%c6_71, %c0_72, %c0_73] : memref<8x25x128xbf16, #tpu.memory_space<vmem>>, vector<1x25x128xbf16>
    %296 = vector.shape_cast %295 : vector<1x25x128xbf16> to vector<25x128xbf16>
    %cst_74 = arith.constant dense<0.000000e+00> : vector<8x128xf32>
    %297 = tpu.matmul %294, %296, %cst_74 {dimension_numbers = #tpu.dot_dimension_numbers<[1], [0], [0], [1], [0, 0, 1, 1], [], []>} : vector<8x25xbf16>, vector<25x128xbf16>, vector<8x128xf32> -> vector<8x128xf32>
    %298 = arith.addf %260, %297 : vector<8x128xf32>
    %299 = vector.extract_strided_slice %17 {offsets = [0, 7], sizes = [8, 1], strides = [1, 1]} : vector<8x8xf32> to vector<8x1xf32>
    %300 = vector.broadcast %299 : vector<8x1xf32> to vector<8x25xf32>
    %301 = arith.mulf %300, %1 : vector<8x25xf32>
    %302 = vector.extract_strided_slice %19 {offsets = [0, 7], sizes = [8, 1], strides = [1, 1]} : vector<8x8xf32> to vector<8x1xf32>
    %303 = vector.broadcast %302 : vector<8x1xf32> to vector<8x25xf32>
    %304 = arith.mulf %303, %3 : vector<8x25xf32>
    %305 = arith.addf %301, %304 : vector<8x25xf32>
    %306 = vector.extract_strided_slice %21 {offsets = [0, 7], sizes = [8, 1], strides = [1, 1]} : vector<8x8xf32> to vector<8x1xf32>
    %307 = vector.broadcast %306 : vector<8x1xf32> to vector<8x25xf32>
    %308 = arith.mulf %307, %5 : vector<8x25xf32>
    %309 = arith.addf %305, %308 : vector<8x25xf32>
    %310 = vector.extract_strided_slice %23 {offsets = [0, 7], sizes = [8, 1], strides = [1, 1]} : vector<8x8xf32> to vector<8x1xf32>
    %311 = vector.broadcast %310 : vector<8x1xf32> to vector<8x25xf32>
    %312 = arith.mulf %311, %7 : vector<8x25xf32>
    %313 = arith.addf %309, %312 : vector<8x25xf32>
    %314 = vector.extract_strided_slice %25 {offsets = [0, 7], sizes = [8, 1], strides = [1, 1]} : vector<8x8xf32> to vector<8x1xf32>
    %315 = vector.broadcast %314 : vector<8x1xf32> to vector<8x25xf32>
    %316 = arith.mulf %315, %9 : vector<8x25xf32>
    %317 = arith.addf %313, %316 : vector<8x25xf32>
    %318 = vector.extract_strided_slice %27 {offsets = [0, 7], sizes = [8, 1], strides = [1, 1]} : vector<8x8xf32> to vector<8x1xf32>
    %319 = vector.broadcast %318 : vector<8x1xf32> to vector<8x25xf32>
    %320 = arith.mulf %319, %11 : vector<8x25xf32>
    %321 = arith.addf %317, %320 : vector<8x25xf32>
    %322 = vector.extract_strided_slice %29 {offsets = [0, 7], sizes = [8, 1], strides = [1, 1]} : vector<8x8xf32> to vector<8x1xf32>
    %323 = vector.broadcast %322 : vector<8x1xf32> to vector<8x25xf32>
    %324 = arith.mulf %323, %13 : vector<8x25xf32>
    %325 = arith.addf %321, %324 : vector<8x25xf32>
    %326 = vector.extract_strided_slice %31 {offsets = [0, 7], sizes = [8, 1], strides = [1, 1]} : vector<8x8xf32> to vector<8x1xf32>
    %327 = vector.broadcast %326 : vector<8x1xf32> to vector<8x25xf32>
    %328 = arith.mulf %327, %15 : vector<8x25xf32>
    %329 = arith.addf %325, %328 : vector<8x25xf32>
    %cst_75 = arith.constant 0.000000e+00 : f32
    %330 = vector.broadcast %cst_75 : f32 to vector<8x25xf32>
    %331 = arith.maximumf %329, %330 : vector<8x25xf32>
    %332 = arith.truncf %331 : vector<8x25xf32> to vector<8x25xbf16>
    %c7_76 = arith.constant 7 : index
    %c0_77 = arith.constant 0 : index
    %c0_78 = arith.constant 0 : index
    %333 = vector.load %arg4[%c7_76, %c0_77, %c0_78] : memref<8x25x128xbf16, #tpu.memory_space<vmem>>, vector<1x25x128xbf16>
    %334 = vector.shape_cast %333 : vector<1x25x128xbf16> to vector<25x128xbf16>
    %cst_79 = arith.constant dense<0.000000e+00> : vector<8x128xf32>
    %335 = tpu.matmul %332, %334, %cst_79 {dimension_numbers = #tpu.dot_dimension_numbers<[1], [0], [0], [1], [0, 0, 1, 1], [], []>} : vector<8x25xbf16>, vector<25x128xbf16>, vector<8x128xf32> -> vector<8x128xf32>
    %336 = arith.addf %298, %335 : vector<8x128xf32>
    %c0_80 = arith.constant 0 : index
    %c0_81 = arith.constant 0 : index
    %337 = vector.load %arg5[%c0_80, %c0_81] : memref<1x128xf32, #tpu.memory_space<vmem>>, vector<1x128xf32>
    %338 = vector.broadcast %337 : vector<1x128xf32> to vector<8x128xf32>
    %339 = arith.addf %336, %338 : vector<8x128xf32>
    %c0_82 = arith.constant 0 : index
    %c0_83 = arith.constant 0 : index
    %340 = vector.load %arg6[%c0_82, %c0_83] : memref<8x128xf32, #tpu.memory_space<vmem>>, vector<8x128xf32>
    tpu.vector_store %arg6[%c0_82, %c0_83], %339 {strides = array<i32>} : memref<8x128xf32, #tpu.memory_space<vmem>>, vector<8x128xf32>,
    return
  }
  func.func @transform_0(%arg0: i32, %arg1: i32) -> (i32, i32, i32) {
    %c0_i32 = arith.constant 0 : i32
    %c0_i32_0 = arith.constant 0 : i32
    %c0_i32_1 = arith.constant 0 : i32
    return %c0_i32, %arg0, %c0_i32_0 : i32, i32, i32
  }
  func.func @transform_1(%arg0: i32, %arg1: i32) -> (i32, i32, i32) {
    %c0_i32 = arith.constant 0 : i32
    %c0_i32_0 = arith.constant 0 : i32
    %c0_i32_1 = arith.constant 0 : i32
    return %c0_i32, %arg0, %c0_i32_0 : i32, i32, i32
  }
  func.func @transform_2(%arg0: i32, %arg1: i32) -> (i32, i32, i32) {
    %c0_i32 = arith.constant 0 : i32
    %c0_i32_0 = arith.constant 0 : i32
    %c0_i32_1 = arith.constant 0 : i32
    return %c0_i32, %c0_i32_0, %arg1 : i32, i32, i32
  }
  func.func @transform_3(%arg0: i32, %arg1: i32) -> (i32, i32) {
    %c0_i32 = arith.constant 0 : i32
    %c0_i32_0 = arith.constant 0 : i32
    return %c0_i32, %arg1 : i32, i32
  }
  func.func @transform_4(%arg0: i32, %arg1: i32) -> (i32, i32) {
    %c0_i32 = arith.constant 0 : i32
    return %arg0, %arg1 : i32, i32
  }
}

</mosaic_0001>

<llo_original>
// kernel: tpu_custom_call.1
$region0: #{tpu_custom_call.1}
  #allocation0 [shape = 'u32[]', space=smem, size = 0x4, offset = 0x4, fixed_abs, tag = 'smem constant byte address 0x4 - core index']
  #allocation1 [shape = 'u32[72,128]{1,0:T(1,128)}', space=vmem, size = 0x9000, scoped, tag = 'internal scratch']
  %s0 = inlined_call_operand.vmem [shape: f32[8,16,25], index: 0, kind: input, shape index: {}]
  %s1 = inlined_call_operand.vmem [shape: f32[8,16,8], index: 1, kind: input, shape index: {}]
  %s2 = inlined_call_operand.vmem [shape: bf16[8,25,128], index: 2, kind: input, shape index: {}]
  %s3 = inlined_call_operand.vmem [shape: f32[1,128], index: 3, kind: input, shape index: {}]
  %s4 = inlined_call_operand.hbm [shape: f32[16,128], index: 4, kind: output, shape index: {}]
  %s5 = sld [smem:[#allocation0]]
  $region125: #{tpu_custom_call.1} parent=0
    _
  %s7 = ssub.s32 1, %s5
  %s8 = scalar_select 0, %s7, %s5
  $region1: #{tpu_custom_call.1} parent=0
    #allocation2 [shape = 'u8[65536]{0}', space=vmem, size = 0x10000, scoped, tag = 'input window, operand 0']
    #allocation3 [shape = 'u8[65536]{0}', space=vmem, size = 0x10000, scoped, tag = 'input window, operand 1']
    #allocation4 [shape = 'u8[8192]{0}', space=vmem, size = 0x2000, scoped, tag = 'output window, operand 0']
    #allocation5 [shape = 's32[2]{0}', space=sflag, size = 0x8, scoped, tag = 'scoped memory for tpu_custom_call.1']
    %9 = vsyncpa [#allocation5], 0
    %s10 = scalar_lea.sflag [#allocation5], 1
    %11 = vsyncpa %s10, 0
    loop: start=0, step=1, limit=4
    $region2: #{tpu_custom_call.1} parent=1 // loop_pre_header
      _
    $region3: #{tpu_custom_call.1} parent=1 // loop_header
      %s13 = sphi 0, %s17
      %p14 = scmp.ge.s32.totalorder %s13, 4
      %s20 = sphi 0, %s32
      %s21 = sphi 0, %s28
      %s22 = sphi 0, %s20
      %s23 = sphi 0, %s21
      %s24 = sphi 0, %s22
      %s25 = sphi 0, %s23
      %s35 = sphi 0, %s37
      %s38 = sphi 0, %s35
      %s39 = sphi 0, %s38
      %s55 = sphi 0, %s39
      %s61 = sphi 0, %s63
      %s64 = sphi 0, %s61
      %s65 = sphi 0, %s64
      %s81 = sphi 0, %s65
      %s87 = sphi 0, %s89
      %s90 = sphi 0, %s87
      %s91 = sphi 0, %s90
      %s107 = sphi 0, %s91
      %s113 = sphi 0, %s115
      %s116 = sphi 0, %s113
      %s117 = sphi 0, %s116
      %s133 = sphi 0, %s117
      %s141 = sphi 0, %s143
      %s144 = sphi 0, %s141
      %s145 = sphi 0, %s144
      %s161 = sphi 0, %s145
    $region4: #{tpu_custom_call.1} parent=1 // loop_header_branch
      %16 = sbr.rel (%p14) target = $region8
    $region5: #{tpu_custom_call.1} parent=1 // loop_body
      %s18 = ssub.s32 %s13, 1
      %s19 = ssub.s32 %s13, 2
      %s26 = sadd.s32 1, %s21
      %p27 = scmp.ge.s32.totalorder %s26, 1
      %s28 = scalar_select %p27, 0, %s26
      %s29 = sadd.s32 1, %s20
      %s30 = scalar_select %p27, %s29, %s20
      %p31 = scmp.ge.s32.totalorder %s30, 2
      %s32 = scalar_select %p31, 0, %s30
      %s33 = ssub.s32 %s20, %s32
      %p34 = scmp.eq.s32.totalorder %s33, 0
      %s36 = sadd.s32 %s35, 1
      %s37 = scalar_select %p34, %s35, %s36
      %p40 = pneg %p34
      %p41 = scmp.eq.s32.totalorder %s13, 1
      %p42 = por %p40, %p41
      %p43 = scmp.ne.s32.totalorder %s35, %s38
      %p44 = scmp.eq.s32.totalorder %s13, 0
      %p45 = por %p43, %p44
      %p46 = scmp.ne.s32.totalorder %s35, %s38
      %p47 = scmp.eq.s32.totalorder %s18, 1
      %p48 = por %p46, %p47
      %p49 = scmp.ne.s32.totalorder %s38, %s39
      %p50 = scmp.eq.s32.totalorder %s18, 0
      %p51 = por %p49, %p50
      %p52 = scmp.ne.s32.totalorder %s38, %s39
      %p53 = scmp.eq.s32.totalorder %s19, 1
      %p54 = por %p52, %p53
      %p56 = scmp.ne.s32.totalorder %s39, %s55
      %p57 = scmp.eq.s32.totalorder %s19, 0
      %p58 = por %p56, %p57
      %s59 = ssub.s32 %s20, %s32
      %p60 = scmp.eq.s32.totalorder %s59, 0
      %s62 = sadd.s32 %s61, 1
      %s63 = scalar_select %p60, %s61, %s62
      %p66 = pneg %p60
      %p67 = scmp.eq.s32.totalorder %s13, 1
      %p68 = por %p66, %p67
      %p69 = scmp.ne.s32.totalorder %s61, %s64
      %p70 = scmp.eq.s32.totalorder %s13, 0
      %p71 = por %p69, %p70
      %p72 = scmp.ne.s32.totalorder %s61, %s64
      %p73 = scmp.eq.s32.totalorder %s18, 1
      %p74 = por %p72, %p73
      %p75 = scmp.ne.s32.totalorder %s64, %s65
      %p76 = scmp.eq.s32.totalorder %s18, 0
      %p77 = por %p75, %p76
      %p78 = scmp.ne.s32.totalorder %s64, %s65
      %p79 = scmp.eq.s32.totalorder %s19, 1
      %p80 = por %p78, %p79
      %p82 = scmp.ne.s32.totalorder %s65, %s81
      %p83 = scmp.eq.s32.totalorder %s19, 0
      %p84 = por %p82, %p83
      %s85 = ssub.s32 %s21, %s28
      %p86 = scmp.eq.s32.totalorder %s85, 0
      %s88 = sadd.s32 %s87, 1
      %s89 = scalar_select %p86, %s87, %s88
      %p92 = pneg %p86
      %p93 = scmp.eq.s32.totalorder %s13, 1
      %p94 = por %p92, %p93
      %p95 = scmp.ne.s32.totalorder %s87, %s90
      %p96 = scmp.eq.s32.totalorder %s13, 0
      %p97 = por %p95, %p96
      %p98 = scmp.ne.s32.totalorder %s87, %s90
      %p99 = scmp.eq.s32.totalorder %s18, 1
      %p100 = por %p98, %p99
      %p101 = scmp.ne.s32.totalorder %s90, %s91
      %p102 = scmp.eq.s32.totalorder %s18, 0
      %p103 = por %p101, %p102
      %p104 = scmp.ne.s32.totalorder %s90, %s91
      %p105 = scmp.eq.s32.totalorder %s19, 1
      %p106 = por %p104, %p105
      %p108 = scmp.ne.s32.totalorder %s91, %s107
      %p109 = scmp.eq.s32.totalorder %s19, 0
      %p110 = por %p108, %p109
      %s111 = ssub.s32 %s21, %s28
      %p112 = scmp.eq.s32.totalorder %s111, 0
      %s114 = sadd.s32 %s113, 1
      %s115 = scalar_select %p112, %s113, %s114
      %p118 = pneg %p112
      %p119 = scmp.eq.s32.totalorder %s13, 1
      %p120 = por %p118, %p119
      %p121 = scmp.ne.s32.totalorder %s113, %s116
      %p122 = scmp.eq.s32.totalorder %s13, 0
      %p123 = por %p121, %p122
      %p124 = scmp.ne.s32.totalorder %s113, %s116
      %p125 = scmp.eq.s32.totalorder %s18, 1
      %p126 = por %p124, %p125
      %p127 = scmp.ne.s32.totalorder %s116, %s117
      %p128 = scmp.eq.s32.totalorder %s18, 0
      %p129 = por %p127, %p128
      %p130 = scmp.ne.s32.totalorder %s116, %s117
      %p131 = scmp.eq.s32.totalorder %s19, 1
      %p132 = por %p130, %p131
      %p134 = scmp.ne.s32.totalorder %s117, %s133
      %p135 = scmp.eq.s32.totalorder %s19, 0
      %p136 = por %p134, %p135
      %s137 = ssub.s32 %s20, %s32
      %s138 = ssub.s32 %s21, %s28
      %s139 = sor.u32 %s137, %s138
      %p140 = scmp.eq.s32.totalorder %s139, 0
      %s142 = sadd.s32 %s141, 1
      %s143 = scalar_select %p140, %s141, %s142
      %p146 = pneg %p140
      %p147 = scmp.eq.s32.totalorder %s13, 1
      %p148 = por %p146, %p147
      %p149 = scmp.ne.s32.totalorder %s141, %s144
      %p150 = scmp.eq.s32.totalorder %s13, 0
      %p151 = por %p149, %p150
      %p152 = scmp.ne.s32.totalorder %s141, %s144
      %p153 = scmp.eq.s32.totalorder %s18, 1
      %p154 = por %p152, %p153
      %p155 = scmp.ne.s32.totalorder %s144, %s145
      %p156 = scmp.eq.s32.totalorder %s18, 0
      %p157 = por %p155, %p156
      %p158 = scmp.ne.s32.totalorder %s144, %s145
      %p159 = scmp.eq.s32.totalorder %s19, 1
      %p160 = por %p158, %p159
      %p162 = scmp.ne.s32.totalorder %s145, %s161
      %p163 = scmp.eq.s32.totalorder %s19, 0
      %p164 = por %p162, %p163
      %p165 = scmp.le.s32.totalorder 1, %s13
      %p166 = scmp.lt.s32.totalorder %s13, 3
      %p167 = pnand %p165, %p166
      %p168 = pneg %p167
      // Predicated region
      $region9: #{tpu_custom_call.1} parent=5 // pred_check
        _
      $region10: #{tpu_custom_call.1} parent=5 // pred_check_branch
        %170 = sbr.rel (%p167) target = $region12
      $region11: #{tpu_custom_call.1} parent=5 // pred_region
        %s171 = ssub.s32 %s13, 1
        // Predicated region
        $region13: #{tpu_custom_call.1} parent=11 // pred_check
          %p172 = pneg %p103
        $region14: #{tpu_custom_call.1} parent=11 // pred_check_branch
          %174 = sbr.rel (%p172) target = $region16
        $region15: #{tpu_custom_call.1} parent=11 // pred_region
          %p175 = scmp.lt.s32.totalorder %s23, 0
          %s176 = scalar_select %p175, %s23, 0
          %s177 = smul.addr %s176, 4
          %s178 = scalar_lea.vmem %s2, %s177
        $region16: #{tpu_custom_call.1} parent=11 // pred_fallthru
          _
        // Predicated region
        $region17: #{tpu_custom_call.1} parent=11 // pred_check
          %p179 = pneg %p129
        $region18: #{tpu_custom_call.1} parent=11 // pred_check_branch
          %181 = sbr.rel (%p179) target = $region20
        $region19: #{tpu_custom_call.1} parent=11 // pred_region
          %p182 = scmp.lt.s32.totalorder %s23, 0
          %s183 = scalar_select %p182, %s23, 0
          %s184 = scalar_lea.vmem %s3, %s183
        $region20: #{tpu_custom_call.1} parent=11 // pred_fallthru
          _
      $region12: #{tpu_custom_call.1} parent=5 // pred_fallthru
        _
      %p185 = scmp.lt.s32.totalorder %s13, 2
      // Predicated region
      $region21: #{tpu_custom_call.1} parent=5 // pred_check
        %p186 = pneg %p185
      $region22: #{tpu_custom_call.1} parent=5 // pred_check_branch
        %188 = sbr.rel (%p186) target = $region24
      $region23: #{tpu_custom_call.1} parent=5 // pred_region
        // Predicated region
        $region25: #{tpu_custom_call.1} parent=23 // pred_check
          %p189 = pneg %p45
        $region26: #{tpu_custom_call.1} parent=23 // pred_check_branch
          %191 = sbr.rel (%p189) target = $region28
        $region27: #{tpu_custom_call.1} parent=23 // pred_region
          %s192 = sand.u32 %s35, 1
          %s193 = sand.u32 %s35, 1
          %s194 = smul.addr %s193, 64
          %s195 = scalar_lea.vmem [#allocation2], %s194
          %s196 = smul.addr %s20, 8
          %s197 = scalar_lea.vmem %s0, %s196
          // Predicated region
          $region29: #{tpu_custom_call.1} parent=27 // pred_check
            _
          $region30: #{tpu_custom_call.1} parent=27 // pred_check_branch
            %199 = sbr.rel (0) target = $region32
          $region31: #{tpu_custom_call.1} parent=27 // pred_region
            // Predicated region
            $region33: #{tpu_custom_call.1} parent=31 // pred_check
              _
            $region34: #{tpu_custom_call.1} parent=31 // pred_check_branch
              %201 = sbr.rel (0) target = $region36
            $region35: #{tpu_custom_call.1} parent=31 // pred_region
              // Predicated region
              $region48: #{tpu_custom_call.1} parent=35 // pred_check
                _
              $region49: #{tpu_custom_call.1} parent=35 // pred_check_branch
                %231 = sbr.rel (0) target = $region51
              $region50: #{tpu_custom_call.1} parent=35 // pred_region
                loop: start=0, step=1, limit=1
                $region52: #{tpu_custom_call.1} parent=50 // loop_pre_header
                  _
                $region53: #{tpu_custom_call.1} parent=50 // loop_header
                  %s233 = sphi 0, %s237
                  %p234 = scmp.ge.s32.totalorder %s233, 1
                  %s238 = sphi %s197, %s197
                  %s239 = sphi %s195, %s195
                $region54: #{tpu_custom_call.1} parent=50 // loop_header_branch
                  %236 = sbr.rel (%p234) target = $region58
                $region55: #{tpu_custom_call.1} parent=50 // loop_body
                  %v240 = vld [vmem:[%s238] sm:$0xff]
                  %241 = vst [vmem:[%s239] sm:$0xff] %v240
                  %v242 = vld [vmem:[%s238 + $0x10] sm:$0xff]
                  %243 = vst [vmem:[%s239 + $0x8] sm:$0xff] %v242
                  %v244 = vld [vmem:[%s238 + $0x20] sm:$0xff]
                  %245 = vst [vmem:[%s239 + $0x10] sm:$0xff] %v244
                  %v246 = vld [vmem:[%s238 + $0x30] sm:$0xff]
                  %247 = vst [vmem:[%s239 + $0x18] sm:$0xff] %v246
                  %v248 = vld [vmem:[%s238 + $0x40] sm:$0xff]
                  %249 = vst [vmem:[%s239 + $0x20] sm:$0xff] %v248
                  %v250 = vld [vmem:[%s238 + $0x50] sm:$0xff]
                  %251 = vst [vmem:[%s239 + $0x28] sm:$0xff] %v250
                  %v252 = vld [vmem:[%s238 + $0x60] sm:$0xff]
                  %253 = vst [vmem:[%s239 + $0x30] sm:$0xff] %v252
                  %v254 = vld [vmem:[%s238 + $0x70] sm:$0xff]
                  %255 = vst [vmem:[%s239 + $0x38] sm:$0xff] %v254
                $region56: #{tpu_custom_call.1} parent=50 // loop_footer
                  %s237 = sadd.s32 1, %s233
                $region57: #{tpu_custom_call.1} parent=50 // loop_footer_branch
                  %232 = sbr.rel target = $region53
                $region58: #{tpu_custom_call.1} parent=50 // loop_exit
                  _
              $region51: #{tpu_custom_call.1} parent=35 // pred_fallthru
                _
              // Predicated region
              $region59: #{tpu_custom_call.1} parent=35 // pred_check
                _
              $region60: #{tpu_custom_call.1} parent=35 // pred_check_branch
                %257 = sbr.rel target = $region62
              $region61: #{tpu_custom_call.1} parent=35 // pred_region
                _
              $region62: #{tpu_custom_call.1} parent=35 // pred_fallthru
                _
            $region36: #{tpu_custom_call.1} parent=31 // pred_fallthru
              _
            // Predicated region
            $region37: #{tpu_custom_call.1} parent=31 // pred_check
              _
            $region38: #{tpu_custom_call.1} parent=31 // pred_check_branch
              %203 = sbr.rel target = $region40
            $region39: #{tpu_custom_call.1} parent=31 // pred_region
              %s205 = ssub.s32 256, 1
              loop: start=0, step=1, limit=1
              $region41: #{tpu_custom_call.1} parent=39 // loop_pre_header
                _
              $region42: #{tpu_custom_call.1} parent=39 // loop_header
                %s207 = sphi 0, %s211
                %p208 = scmp.ge.s32.totalorder %s207, 1
                %s212 = sphi %s197, %s197
                %s213 = sphi %s195, %s195
              $region43: #{tpu_custom_call.1} parent=39 // loop_header_branch
                %210 = sbr.rel (%p208) target = $region47
              $region44: #{tpu_custom_call.1} parent=39 // loop_body
                %v214 = vld [vmem:[%s212] sm:%s205]
                %215 = vst [vmem:[%s213] sm:%s205] %v214
                %v216 = vld [vmem:[%s212 + $0x10] sm:%s205]
                %217 = vst [vmem:[%s213 + $0x8] sm:%s205] %v216
                %v218 = vld [vmem:[%s212 + $0x20] sm:%s205]
                %219 = vst [vmem:[%s213 + $0x10] sm:%s205] %v218
                %v220 = vld [vmem:[%s212 + $0x30] sm:%s205]
                %221 = vst [vmem:[%s213 + $0x18] sm:%s205] %v220
                %v222 = vld [vmem:[%s212 + $0x40] sm:%s205]
                %223 = vst [vmem:[%s213 + $0x20] sm:%s205] %v222
                %v224 = vld [vmem:[%s212 + $0x50] sm:%s205]
                %225 = vst [vmem:[%s213 + $0x28] sm:%s205] %v224
                %v226 = vld [vmem:[%s212 + $0x60] sm:%s205]
                %227 = vst [vmem:[%s213 + $0x30] sm:%s205] %v226
                %v228 = vld [vmem:[%s212 + $0x70] sm:%s205]
                %229 = vst [vmem:[%s213 + $0x38] sm:%s205] %v228
              $region45: #{tpu_custom_call.1} parent=39 // loop_footer
                %s211 = sadd.s32 1, %s207
              $region46: #{tpu_custom_call.1} parent=39 // loop_footer_branch
                %206 = sbr.rel target = $region42
              $region47: #{tpu_custom_call.1} parent=39 // loop_exit
                _
            $region40: #{tpu_custom_call.1} parent=31 // pred_fallthru
              _
          $region32: #{tpu_custom_call.1} parent=27 // pred_fallthru
            _
          %258 = vnop
        $region28: #{tpu_custom_call.1} parent=23 // pred_fallthru
          _
        // Predicated region
        $region63: #{tpu_custom_call.1} parent=23 // pred_check
          %p259 = pneg %p71
        $region64: #{tpu_custom_call.1} parent=23 // pred_check_branch
          %261 = sbr.rel (%p259) target = $region66
        $region65: #{tpu_custom_call.1} parent=23 // pred_region
          %s262 = sand.u32 %s61, 1
          %s263 = sand.u32 %s61, 1
          %s264 = smul.addr %s263, 64
          %s265 = scalar_lea.vmem [#allocation3], %s264
          %s266 = smul.addr %s20, 8
          %s267 = scalar_lea.vmem %s1, %s266
          // Predicated region
          $region67: #{tpu_custom_call.1} parent=65 // pred_check
            _
          $region68: #{tpu_custom_call.1} parent=65 // pred_check_branch
            %269 = sbr.rel (0) target = $region70
          $region69: #{tpu_custom_call.1} parent=65 // pred_region
            // Predicated region
            $region71: #{tpu_custom_call.1} parent=69 // pred_check
              _
            $region72: #{tpu_custom_call.1} parent=69 // pred_check_branch
              %271 = sbr.rel (0) target = $region74
            $region73: #{tpu_custom_call.1} parent=69 // pred_region
              // Predicated region
              $region86: #{tpu_custom_call.1} parent=73 // pred_check
                _
              $region87: #{tpu_custom_call.1} parent=73 // pred_check_branch
                %301 = sbr.rel (0) target = $region89
              $region88: #{tpu_custom_call.1} parent=73 // pred_region
                loop: start=0, step=1, limit=1
                $region90: #{tpu_custom_call.1} parent=88 // loop_pre_header
                  _
                $region91: #{tpu_custom_call.1} parent=88 // loop_header
                  %s303 = sphi 0, %s307
                  %p304 = scmp.ge.s32.totalorder %s303, 1
                  %s308 = sphi %s267, %s267
                  %s309 = sphi %s265, %s265
                $region92: #{tpu_custom_call.1} parent=88 // loop_header_branch
                  %306 = sbr.rel (%p304) target = $region96
                $region93: #{tpu_custom_call.1} parent=88 // loop_body
                  %v310 = vld [vmem:[%s308] sm:$0xff]
                  %311 = vst [vmem:[%s309] sm:$0xff] %v310
                  %v312 = vld [vmem:[%s308 + $0x10] sm:$0xff]
                  %313 = vst [vmem:[%s309 + $0x8] sm:$0xff] %v312
                  %v314 = vld [vmem:[%s308 + $0x20] sm:$0xff]
                  %315 = vst [vmem:[%s309 + $0x10] sm:$0xff] %v314
                  %v316 = vld [vmem:[%s308 + $0x30] sm:$0xff]
                  %317 = vst [vmem:[%s309 + $0x18] sm:$0xff] %v316
                  %v318 = vld [vmem:[%s308 + $0x40] sm:$0xff]
                  %319 = vst [vmem:[%s309 + $0x20] sm:$0xff] %v318
                  %v320 = vld [vmem:[%s308 + $0x50] sm:$0xff]
                  %321 = vst [vmem:[%s309 + $0x28] sm:$0xff] %v320
                  %v322 = vld [vmem:[%s308 + $0x60] sm:$0xff]
                  %323 = vst [vmem:[%s309 + $0x30] sm:$0xff] %v322
                  %v324 = vld [vmem:[%s308 + $0x70] sm:$0xff]
                  %325 = vst [vmem:[%s309 + $0x38] sm:$0xff] %v324
                $region94: #{tpu_custom_call.1} parent=88 // loop_footer
                  %s307 = sadd.s32 1, %s303
                $region95: #{tpu_custom_call.1} parent=88 // loop_footer_branch
                  %302 = sbr.rel target = $region91
                $region96: #{tpu_custom_call.1} parent=88 // loop_exit
                  _
              $region89: #{tpu_custom_call.1} parent=73 // pred_fallthru
                _
              // Predicated region
              $region97: #{tpu_custom_call.1} parent=73 // pred_check
                _
              $region98: #{tpu_custom_call.1} parent=73 // pred_check_branch
                %327 = sbr.rel target = $region100
              $region99: #{tpu_custom_call.1} parent=73 // pred_region
                _
              $region100: #{tpu_custom_call.1} parent=73 // pred_fallthru
                _
            $region74: #{tpu_custom_call.1} parent=69 // pred_fallthru
              _
            // Predicated region
            $region75: #{tpu_custom_call.1} parent=69 // pred_check
              _
            $region76: #{tpu_custom_call.1} parent=69 // pred_check_branch
              %273 = sbr.rel target = $region78
            $region77: #{tpu_custom_call.1} parent=69 // pred_region
              %s275 = ssub.s32 256, 1
              loop: start=0, step=1, limit=1
              $region79: #{tpu_custom_call.1} parent=77 // loop_pre_header
                _
              $region80: #{tpu_custom_call.1} parent=77 // loop_header
                %s277 = sphi 0, %s281
                %p278 = scmp.ge.s32.totalorder %s277, 1
                %s282 = sphi %s267, %s267
                %s283 = sphi %s265, %s265
              $region81: #{tpu_custom_call.1} parent=77 // loop_header_branch
                %280 = sbr.rel (%p278) target = $region85
              $region82: #{tpu_custom_call.1} parent=77 // loop_body
                %v284 = vld [vmem:[%s282] sm:%s275]
                %285 = vst [vmem:[%s283] sm:%s275] %v284
                %v286 = vld [vmem:[%s282 + $0x10] sm:%s275]
                %287 = vst [vmem:[%s283 + $0x8] sm:%s275] %v286
                %v288 = vld [vmem:[%s282 + $0x20] sm:%s275]
                %289 = vst [vmem:[%s283 + $0x10] sm:%s275] %v288
                %v290 = vld [vmem:[%s282 + $0x30] sm:%s275]
                %291 = vst [vmem:[%s283 + $0x18] sm:%s275] %v290
                %v292 = vld [vmem:[%s282 + $0x40] sm:%s275]
                %293 = vst [vmem:[%s283 + $0x20] sm:%s275] %v292
                %v294 = vld [vmem:[%s282 + $0x50] sm:%s275]
                %295 = vst [vmem:[%s283 + $0x28] sm:%s275] %v294
                %v296 = vld [vmem:[%s282 + $0x60] sm:%s275]
                %297 = vst [vmem:[%s283 + $0x30] sm:%s275] %v296
                %v298 = vld [vmem:[%s282 + $0x70] sm:%s275]
                %299 = vst [vmem:[%s283 + $0x38] sm:%s275] %v298
              $region83: #{tpu_custom_call.1} parent=77 // loop_footer
                %s281 = sadd.s32 1, %s277
              $region84: #{tpu_custom_call.1} parent=77 // loop_footer_branch
                %276 = sbr.rel target = $region80
              $region85: #{tpu_custom_call.1} parent=77 // loop_exit
                _
            $region78: #{tpu_custom_call.1} parent=69 // pred_fallthru
              _
          $region70: #{tpu_custom_call.1} parent=65 // pred_fallthru
            _
          %328 = vnop
        $region66: #{tpu_custom_call.1} parent=23 // pred_fallthru
          _
      $region24: #{tpu_custom_call.1} parent=5 // pred_fallthru
        _
      %p329 = scmp.le.s32.totalorder 1, %s13
      %p330 = scmp.lt.s32.totalorder %s13, 3
      %p331 = pnand %p329, %p330
      %p332 = pneg %p331
      // Predicated region
      $region101: #{tpu_custom_call.1} parent=5 // pred_check
        _
      $region102: #{tpu_custom_call.1} parent=5 // pred_check_branch
        %334 = sbr.rel (%p331) target = $region104
      $region103: #{tpu_custom_call.1} parent=5 // pred_region
        %s335 = ssub.s32 %s13, 1
        %s336 = sand.u32 %s38, 1
        %s337 = sand.u32 %s38, 1
        %s338 = smul.addr %s337, 64
        %s339 = scalar_lea.vmem [#allocation2], %s338
        // Predicated region
        $region105: #{tpu_custom_call.1} parent=103 // pred_check
          %p340 = pneg %p51
        $region106: #{tpu_custom_call.1} parent=103 // pred_check_branch
          %342 = sbr.rel (%p340) target = $region108
        $region107: #{tpu_custom_call.1} parent=103 // pred_region
          _
        $region108: #{tpu_custom_call.1} parent=103 // pred_fallthru
          _
        %s343 = sand.u32 %s64, 1
        %s344 = sand.u32 %s64, 1
        %s345 = smul.addr %s344, 64
        %s346 = scalar_lea.vmem [#allocation3], %s345
        // Predicated region
        $region109: #{tpu_custom_call.1} parent=103 // pred_check
          %p347 = pneg %p77
        $region110: #{tpu_custom_call.1} parent=103 // pred_check_branch
          %349 = sbr.rel (%p347) target = $region112
        $region111: #{tpu_custom_call.1} parent=103 // pred_region
          _
        $region112: #{tpu_custom_call.1} parent=103 // pred_fallthru
          _
        %s350 = sand.u32 %s38, 1
        %s351 = sand.u32 %s38, 1
        %s352 = smul.addr %s351, 64
        %s353 = scalar_lea.vmem [#allocation2], %s352
        %p354 = pneg %p51
        %p355 = pneg %p48
        %s356 = sand.u32 %s64, 1
        %s357 = sand.u32 %s64, 1
        %s358 = smul.addr %s357, 64
        %s359 = scalar_lea.vmem [#allocation3], %s358
        %p360 = pneg %p77
        %p361 = pneg %p74
        %p362 = scmp.lt.s32.totalorder %s23, 0
        %s363 = scalar_select %p362, %s23, 0
        %s364 = smul.addr %s363, 4
        %s365 = scalar_lea.vmem %s2, %s364
        %p366 = pneg %p103
        %p367 = pneg %p100
        %p368 = scmp.lt.s32.totalorder %s23, 0
        %s369 = scalar_select %p368, %s23, 0
        %s370 = scalar_lea.vmem %s3, %s369
        %p371 = pneg %p129
        %p372 = pneg %p126
        %p373 = pneg %p157
        %p374 = pneg %p154
        %s375 = sand.u32 %s144, 1
        %s376 = scalar_lea.sflag [#allocation5], %s375
        %s377 = sand.u32 %s144, 1
        %s378 = smul.addr %s377, 8
        %s379 = scalar_lea.vmem [#allocation4], %s378
        %p380 = scmp.lt.s32.totalorder %s23, 0
        %s381 = scalar_select %p380, %s23, 0
        %s382 = smul.addr %s381, 4
        %s383 = scalar_lea.vmem %s2, %s382
        %p384 = scmp.lt.s32.totalorder %s23, 0
        %s385 = scalar_select %p384, %s23, 0
        %s386 = scalar_lea.vmem %s3, %s385
        %v388 = vld [vmem:[%s339] sm:$0xff]
        %s389 = scalar_lea.vmem %s339, 8 [#allocation2]
        %v390 = vld [vmem:[%s389] sm:$0xff]
        %s391 = scalar_lea.vmem %s339, 16 [#allocation2]
        %v392 = vld [vmem:[%s391] sm:$0xff]
        %s393 = scalar_lea.vmem %s339, 24 [#allocation2]
        %v394 = vld [vmem:[%s393] sm:$0xff]
        %s395 = scalar_lea.vmem %s339, 32 [#allocation2]
        %v396 = vld [vmem:[%s395] sm:$0xff]
        %s397 = scalar_lea.vmem %s339, 40 [#allocation2]
        %v398 = vld [vmem:[%s397] sm:$0xff]
        %s399 = scalar_lea.vmem %s339, 48 [#allocation2]
        %v400 = vld [vmem:[%s399] sm:$0xff]
        %s401 = scalar_lea.vmem %s339, 56 [#allocation2]
        %v402 = vld [vmem:[%s401] sm:$0xff]
        %v403 = vld [vmem:[%s346] sm:$0xff]
        %s404 = scalar_lea.vmem %s346, 8 [#allocation3]
        %v405 = vld [vmem:[%s404] sm:$0xff]
        %s406 = scalar_lea.vmem %s346, 16 [#allocation3]
        %v407 = vld [vmem:[%s406] sm:$0xff]
        %s408 = scalar_lea.vmem %s346, 24 [#allocation3]
        %v409 = vld [vmem:[%s408] sm:$0xff]
        %s410 = scalar_lea.vmem %s346, 32 [#allocation3]
        %v411 = vld [vmem:[%s410] sm:$0xff]
        %s412 = scalar_lea.vmem %s346, 40 [#allocation3]
        %v413 = vld [vmem:[%s412] sm:$0xff]
        %s414 = scalar_lea.vmem %s346, 48 [#allocation3]
        %v415 = vld [vmem:[%s414] sm:$0xff]
        %s416 = scalar_lea.vmem %s346, 56 [#allocation3]
        %v417 = vld [vmem:[%s416] sm:$0xff]
        %419 = vset.pattern.permute.xlu0 0
        %420 = vperm.xlu0 %419, %v403
        %v421 = vpop.permute.xlu0 %420
        %v423 = vmul.f32 %v421, %v388
        %425 = vset.pattern.permute.xlu0 0
        %426 = vperm.xlu0 %425, %v405
        %v427 = vpop.permute.xlu0 %426
        %v429 = vmul.f32 %v427, %v390
        %v430 = vadd.f32 %v423, %v429
        %432 = vset.pattern.permute.xlu0 0
        %433 = vperm.xlu0 %432, %v407
        %v434 = vpop.permute.xlu0 %433
        %v436 = vmul.f32 %v434, %v392
        %v437 = vadd.f32 %v430, %v436
        %439 = vset.pattern.permute.xlu0 0
        %440 = vperm.xlu0 %439, %v409
        %v441 = vpop.permute.xlu0 %440
        %v443 = vmul.f32 %v441, %v394
        %v444 = vadd.f32 %v437, %v443
        %446 = vset.pattern.permute.xlu0 0
        %447 = vperm.xlu0 %446, %v411
        %v448 = vpop.permute.xlu0 %447
        %v450 = vmul.f32 %v448, %v396
        %v451 = vadd.f32 %v444, %v450
        %453 = vset.pattern.permute.xlu0 0
        %454 = vperm.xlu0 %453, %v413
        %v455 = vpop.permute.xlu0 %454
        %v457 = vmul.f32 %v455, %v398
        %v458 = vadd.f32 %v451, %v457
        %460 = vset.pattern.permute.xlu0 0
        %461 = vperm.xlu0 %460, %v415
        %v462 = vpop.permute.xlu0 %461
        %v464 = vmul.f32 %v462, %v400
        %v465 = vadd.f32 %v458, %v464
        %467 = vset.pattern.permute.xlu0 0
        %468 = vperm.xlu0 %467, %v417
        %v469 = vpop.permute.xlu0 %468
        %v471 = vmul.f32 %v469, %v402
        %v472 = vadd.f32 %v465, %v471
        %v473 = vmax.f32 %v472, 0.0
        %v474 = vpack.c.bf16 %v473, %v473
        %v475 = vld [vmem:[%s383] sm:$0xf]
        %v476 = vld [vmem:[%s383 + $0x4] sm:$0xf]
        %v477 = vld [vmem:[%s383 + $0x8] sm:$0xf]
        %v478 = vld [vmem:[%s383 + $0xc] sm:$0x1]
        %479 = vset.pattern.permute.xlu0 1
        %480 = vperm.xlu0 %479, %v403
        %v481 = vpop.permute.xlu0 %480
        %v483 = vmul.f32 %v481, %v388
        %484 = vset.pattern.permute.xlu0 1
        %485 = vperm.xlu0 %484, %v405
        %v486 = vpop.permute.xlu0 %485
        %v488 = vmul.f32 %v486, %v390
        %v489 = vadd.f32 %v483, %v488
        %490 = vset.pattern.permute.xlu0 1
        %491 = vperm.xlu0 %490, %v407
        %v492 = vpop.permute.xlu0 %491
        %v494 = vmul.f32 %v492, %v392
        %v495 = vadd.f32 %v489, %v494
        %496 = vset.pattern.permute.xlu0 1
        %497 = vperm.xlu0 %496, %v409
        %v498 = vpop.permute.xlu0 %497
        %v500 = vmul.f32 %v498, %v394
        %v501 = vadd.f32 %v495, %v500
        %502 = vset.pattern.permute.xlu0 1
        %503 = vperm.xlu0 %502, %v411
        %v504 = vpop.permute.xlu0 %503
        %v506 = vmul.f32 %v504, %v396
        %v507 = vadd.f32 %v501, %v506
        %508 = vset.pattern.permute.xlu0 1
        %509 = vperm.xlu0 %508, %v413
        %v510 = vpop.permute.xlu0 %509
        %v512 = vmul.f32 %v510, %v398
        %v513 = vadd.f32 %v507, %v512
        %514 = vset.pattern.permute.xlu0 1
        %515 = vperm.xlu0 %514, %v415
        %v516 = vpop.permute.xlu0 %515
        %v518 = vmul.f32 %v516, %v400
        %v519 = vadd.f32 %v513, %v518
        %520 = vset.pattern.permute.xlu0 1
        %521 = vperm.xlu0 %520, %v417
        %v522 = vpop.permute.xlu0 %521
        %v524 = vmul.f32 %v522, %v402
        %v525 = vadd.f32 %v519, %v524
        %v526 = vmax.f32 %v525, 0.0
        %v527 = vpack.c.bf16 %v526, %v526
        %s528 = scalar_lea.vmem %s383, 16
        %v529 = vld [vmem:[%s528] sm:$0xf]
        %v530 = vld [vmem:[%s528 + $0x4] sm:$0xf]
        %v531 = vld [vmem:[%s528 + $0x8] sm:$0xf]
        %v532 = vld [vmem:[%s528 + $0xc] sm:$0x1]
        %v537 = vunpack.c.l.b16 %v529
        %v538 = vunpack.c.l.b16 %v530
        %v539 = vunpack.c.l.b16 %v531
        %v540 = vunpack.c.l.b16 %v532
        %v541 = vpack.c.b16 %v538, %v537
        %v542 = vpack.c.b16 %v540, %v539
        %vm544 = vcmask 203776
        %v546 = vsel %vm544, %v527, 0
        %vm548 = vcmask 1043456
        %vm549 = vcmask 1044480
        %v550 = vsel %vm548, 4294967295, 65535
        %v551 = vsel %vm549, %v550, 0
        %v553 = vand.u32 %v542, %v551
        %555 = vmatpush.bf16.msra.mxu0 0
        %556 = vmatpush.bf16.msra.mxu0 0
        %557 = vmatpush.bf16.msra.mxu0 0
        %558 = vmatpush.bf16.msra.mxu0 0
        %559 = vmatpush.bf16.msra.mxu0 0
        %560 = vmatpush.bf16.msra.mxu0 0
        %561 = vmatpush.bf16.msra.mxu0 %v553
        %562 = vmatpush.bf16.msra.mxu0 %v541
        %563 = vmatmul.bf16.gmra.mxu0 %v546
        %v564 = vpop.f32.mrf.mxu0
        %v565 = vadd.f32 0.0, %v564
        %v566 = vpop.f32.mrf.mxu0
        %567 = vdwg.mxu0
        %v572 = vunpack.c.l.b16 %v475
        %v573 = vunpack.c.l.b16 %v476
        %v574 = vunpack.c.l.b16 %v477
        %v575 = vunpack.c.l.b16 %v478
        %v576 = vpack.c.b16 %v573, %v572
        %v577 = vpack.c.b16 %v575, %v574
        %v580 = vsel %vm544, %v474, 0
        %v583 = vand.u32 %v577, %v551
        %585 = vmatpush.bf16.msra.mxu0 0
        %586 = vmatpush.bf16.msra.mxu0 0
        %587 = vmatpush.bf16.msra.mxu0 0
        %588 = vmatpush.bf16.msra.mxu0 0
        %589 = vmatpush.bf16.msra.mxu0 0
        %590 = vmatpush.bf16.msra.mxu0 0
        %591 = vmatpush.bf16.msra.mxu0 %v583
        %592 = vmatpush.bf16.msra.mxu0 %v576
        %593 = vmatmul.bf16.gmra.mxu0 %v580
        %v594 = vpop.f32.mrf.mxu0
        %v595 = vadd.f32 %v565, %v594
        %v596 = vpop.f32.mrf.mxu0
        %597 = vdwg.mxu0
        %598 = vset.pattern.permute.xlu0 2
        %599 = vperm.xlu0 %598, %v403
        %v600 = vpop.permute.xlu0 %599
        %v602 = vmul.f32 %v600, %v388
        %603 = vset.pattern.permute.xlu0 2
        %604 = vperm.xlu0 %603, %v405
        %v605 = vpop.permute.xlu0 %604
        %v607 = vmul.f32 %v605, %v390
        %v608 = vadd.f32 %v602, %v607
        %609 = vset.pattern.permute.xlu0 2
        %610 = vperm.xlu0 %609, %v407
        %v611 = vpop.permute.xlu0 %610
        %v613 = vmul.f32 %v611, %v392
        %v614 = vadd.f32 %v608, %v613
        %615 = vset.pattern.permute.xlu0 2
        %616 = vperm.xlu0 %615, %v409
        %v617 = vpop.permute.xlu0 %616
        %v619 = vmul.f32 %v617, %v394
        %v620 = vadd.f32 %v614, %v619
        %621 = vset.pattern.permute.xlu0 2
        %622 = vperm.xlu0 %621, %v411
        %v623 = vpop.permute.xlu0 %622
        %v625 = vmul.f32 %v623, %v396
        %v626 = vadd.f32 %v620, %v625
        %627 = vset.pattern.permute.xlu0 2
        %628 = vperm.xlu0 %627, %v413
        %v629 = vpop.permute.xlu0 %628
        %v631 = vmul.f32 %v629, %v398
        %v632 = vadd.f32 %v626, %v631
        %633 = vset.pattern.permute.xlu0 2
        %634 = vperm.xlu0 %633, %v415
        %v635 = vpop.permute.xlu0 %634
        %v637 = vmul.f32 %v635, %v400
        %v638 = vadd.f32 %v632, %v637
        %639 = vset.pattern.permute.xlu0 2
        %640 = vperm.xlu0 %639, %v417
        %v641 = vpop.permute.xlu0 %640
        %v643 = vmul.f32 %v641, %v402
        %v644 = vadd.f32 %v638, %v643
        %v645 = vmax.f32 %v644, 0.0
        %v646 = vpack.c.bf16 %v645, %v645
        %s647 = scalar_lea.vmem %s383, 32
        %v648 = vld [vmem:[%s647] sm:$0xf]
        %v649 = vld [vmem:[%s647 + $0x4] sm:$0xf]
        %v650 = vld [vmem:[%s647 + $0x8] sm:$0xf]
        %v651 = vld [vmem:[%s647 + $0xc] sm:$0x1]
        %v656 = vunpack.c.l.b16 %v648
        %v657 = vunpack.c.l.b16 %v649
        %v658 = vunpack.c.l.b16 %v650
        %v659 = vunpack.c.l.b16 %v651
        %v660 = vpack.c.b16 %v657, %v656
        %v661 = vpack.c.b16 %v659, %v658
        %v664 = vsel %vm544, %v646, 0
        %v667 = vand.u32 %v661, %v551
        %669 = vmatpush.bf16.msra.mxu0 0
        %670 = vmatpush.bf16.msra.mxu0 0
        %671 = vmatpush.bf16.msra.mxu0 0
        %672 = vmatpush.bf16.msra.mxu0 0
        %673 = vmatpush.bf16.msra.mxu0 0
        %674 = vmatpush.bf16.msra.mxu0 0
        %675 = vmatpush.bf16.msra.mxu0 %v667
        %676 = vmatpush.bf16.msra.mxu0 %v660
        %677 = vmatmul.bf16.gmra.mxu0 %v664
        %v678 = vpop.f32.mrf.mxu0
        %v679 = vadd.f32 0.0, %v678
        %v680 = vpop.f32.mrf.mxu0
        %681 = vdwg.mxu0
        %v682 = vadd.f32 %v595, %v679
        %683 = vset.pattern.permute.xlu0 3
        %684 = vperm.xlu0 %683, %v403
        %v685 = vpop.permute.xlu0 %684
        %v687 = vmul.f32 %v685, %v388
        %688 = vset.pattern.permute.xlu0 3
        %689 = vperm.xlu0 %688, %v405
        %v690 = vpop.permute.xlu0 %689
        %v692 = vmul.f32 %v690, %v390
        %v693 = vadd.f32 %v687, %v692
        %694 = vset.pattern.permute.xlu0 3
        %695 = vperm.xlu0 %694, %v407
        %v696 = vpop.permute.xlu0 %695
        %v698 = vmul.f32 %v696, %v392
        %v699 = vadd.f32 %v693, %v698
        %700 = vset.pattern.permute.xlu0 3
        %701 = vperm.xlu0 %700, %v409
        %v702 = vpop.permute.xlu0 %701
        %v704 = vmul.f32 %v702, %v394
        %v705 = vadd.f32 %v699, %v704
        %706 = vset.pattern.permute.xlu0 3
        %707 = vperm.xlu0 %706, %v411
        %v708 = vpop.permute.xlu0 %707
        %v710 = vmul.f32 %v708, %v396
        %v711 = vadd.f32 %v705, %v710
        %712 = vset.pattern.permute.xlu0 3
        %713 = vperm.xlu0 %712, %v413
        %v714 = vpop.permute.xlu0 %713
        %v716 = vmul.f32 %v714, %v398
        %v717 = vadd.f32 %v711, %v716
        %718 = vset.pattern.permute.xlu0 3
        %719 = vperm.xlu0 %718, %v415
        %v720 = vpop.permute.xlu0 %719
        %v722 = vmul.f32 %v720, %v400
        %v723 = vadd.f32 %v717, %v722
        %724 = vset.pattern.permute.xlu0 3
        %725 = vperm.xlu0 %724, %v417
        %v726 = vpop.permute.xlu0 %725
        %v728 = vmul.f32 %v726, %v402
        %v729 = vadd.f32 %v723, %v728
        %v730 = vmax.f32 %v729, 0.0
        %v731 = vpack.c.bf16 %v730, %v730
        %s732 = scalar_lea.vmem %s383, 48
        %v733 = vld [vmem:[%s732] sm:$0xf]
        %v734 = vld [vmem:[%s732 + $0x4] sm:$0xf]
        %v735 = vld [vmem:[%s732 + $0x8] sm:$0xf]
        %v736 = vld [vmem:[%s732 + $0xc] sm:$0x1]
        %v741 = vunpack.c.l.b16 %v733
        %v742 = vunpack.c.l.b16 %v734
        %v743 = vunpack.c.l.b16 %v735
        %v744 = vunpack.c.l.b16 %v736
        %v745 = vpack.c.b16 %v742, %v741
        %v746 = vpack.c.b16 %v744, %v743
        %v749 = vsel %vm544, %v731, 0
        %v752 = vand.u32 %v746, %v551
        %754 = vmatpush.bf16.msra.mxu0 0
        %755 = vmatpush.bf16.msra.mxu0 0
        %756 = vmatpush.bf16.msra.mxu0 0
        %757 = vmatpush.bf16.msra.mxu0 0
        %758 = vmatpush.bf16.msra.mxu0 0
        %759 = vmatpush.bf16.msra.mxu0 0
        %760 = vmatpush.bf16.msra.mxu0 %v752
        %761 = vmatpush.bf16.msra.mxu0 %v745
        %762 = vmatmul.bf16.gmra.mxu0 %v749
        %v763 = vpop.f32.mrf.mxu0
        %v764 = vadd.f32 0.0, %v763
        %v765 = vpop.f32.mrf.mxu0
        %766 = vdwg.mxu0
        %v767 = vadd.f32 %v682, %v764
        %768 = vset.pattern.permute.xlu0 4
        %769 = vperm.xlu0 %768, %v403
        %v770 = vpop.permute.xlu0 %769
        %v772 = vmul.f32 %v770, %v388
        %773 = vset.pattern.permute.xlu0 4
        %774 = vperm.xlu0 %773, %v405
        %v775 = vpop.permute.xlu0 %774
        %v777 = vmul.f32 %v775, %v390
        %v778 = vadd.f32 %v772, %v777
        %779 = vset.pattern.permute.xlu0 4
        %780 = vperm.xlu0 %779, %v407
        %v781 = vpop.permute.xlu0 %780
        %v783 = vmul.f32 %v781, %v392
        %v784 = vadd.f32 %v778, %v783
        %785 = vset.pattern.permute.xlu0 4
        %786 = vperm.xlu0 %785, %v409
        %v787 = vpop.permute.xlu0 %786
        %v789 = vmul.f32 %v787, %v394
        %v790 = vadd.f32 %v784, %v789
        %791 = vset.pattern.permute.xlu0 4
        %792 = vperm.xlu0 %791, %v411
        %v793 = vpop.permute.xlu0 %792
        %v795 = vmul.f32 %v793, %v396
        %v796 = vadd.f32 %v790, %v795
        %797 = vset.pattern.permute.xlu0 4
        %798 = vperm.xlu0 %797, %v413
        %v799 = vpop.permute.xlu0 %798
        %v801 = vmul.f32 %v799, %v398
        %v802 = vadd.f32 %v796, %v801
        %803 = vset.pattern.permute.xlu0 4
        %804 = vperm.xlu0 %803, %v415
        %v805 = vpop.permute.xlu0 %804
        %v807 = vmul.f32 %v805, %v400
        %v808 = vadd.f32 %v802, %v807
        %809 = vset.pattern.permute.xlu0 4
        %810 = vperm.xlu0 %809, %v417
        %v811 = vpop.permute.xlu0 %810
        %v813 = vmul.f32 %v811, %v402
        %v814 = vadd.f32 %v808, %v813
        %v815 = vmax.f32 %v814, 0.0
        %v816 = vpack.c.bf16 %v815, %v815
        %s817 = scalar_lea.vmem %s383, 64
        %v818 = vld [vmem:[%s817] sm:$0xf]
        %v819 = vld [vmem:[%s817 + $0x4] sm:$0xf]
        %v820 = vld [vmem:[%s817 + $0x8] sm:$0xf]
        %v821 = vld [vmem:[%s817 + $0xc] sm:$0x1]
        %v826 = vunpack.c.l.b16 %v818
        %v827 = vunpack.c.l.b16 %v819
        %v828 = vunpack.c.l.b16 %v820
        %v829 = vunpack.c.l.b16 %v821
        %v830 = vpack.c.b16 %v827, %v826
        %v831 = vpack.c.b16 %v829, %v828
        %v834 = vsel %vm544, %v816, 0
        %v837 = vand.u32 %v831, %v551
        %839 = vmatpush.bf16.msra.mxu0 0
        %840 = vmatpush.bf16.msra.mxu0 0
        %841 = vmatpush.bf16.msra.mxu0 0
        %842 = vmatpush.bf16.msra.mxu0 0
        %843 = vmatpush.bf16.msra.mxu0 0
        %844 = vmatpush.bf16.msra.mxu0 0
        %845 = vmatpush.bf16.msra.mxu0 %v837
        %846 = vmatpush.bf16.msra.mxu0 %v830
        %847 = vmatmul.bf16.gmra.mxu0 %v834
        %v848 = vpop.f32.mrf.mxu0
        %v849 = vadd.f32 0.0, %v848
        %v850 = vpop.f32.mrf.mxu0
        %851 = vdwg.mxu0
        %v852 = vadd.f32 %v767, %v849
        %853 = vset.pattern.permute.xlu0 5
        %854 = vperm.xlu0 %853, %v403
        %v855 = vpop.permute.xlu0 %854
        %v857 = vmul.f32 %v855, %v388
        %858 = vset.pattern.permute.xlu0 5
        %859 = vperm.xlu0 %858, %v405
        %v860 = vpop.permute.xlu0 %859
        %v862 = vmul.f32 %v860, %v390
        %v863 = vadd.f32 %v857, %v862
        %864 = vset.pattern.permute.xlu0 5
        %865 = vperm.xlu0 %864, %v407
        %v866 = vpop.permute.xlu0 %865
        %v868 = vmul.f32 %v866, %v392
        %v869 = vadd.f32 %v863, %v868
        %870 = vset.pattern.permute.xlu0 5
        %871 = vperm.xlu0 %870, %v409
        %v872 = vpop.permute.xlu0 %871
        %v874 = vmul.f32 %v872, %v394
        %v875 = vadd.f32 %v869, %v874
        %876 = vset.pattern.permute.xlu0 5
        %877 = vperm.xlu0 %876, %v411
        %v878 = vpop.permute.xlu0 %877
        %v880 = vmul.f32 %v878, %v396
        %v881 = vadd.f32 %v875, %v880
        %882 = vset.pattern.permute.xlu0 5
        %883 = vperm.xlu0 %882, %v413
        %v884 = vpop.permute.xlu0 %883
        %v886 = vmul.f32 %v884, %v398
        %v887 = vadd.f32 %v881, %v886
        %888 = vset.pattern.permute.xlu0 5
        %889 = vperm.xlu0 %888, %v415
        %v890 = vpop.permute.xlu0 %889
        %v892 = vmul.f32 %v890, %v400
        %v893 = vadd.f32 %v887, %v892
        %894 = vset.pattern.permute.xlu0 5
        %895 = vperm.xlu0 %894, %v417
        %v896 = vpop.permute.xlu0 %895
        %v898 = vmul.f32 %v896, %v402
        %v899 = vadd.f32 %v893, %v898
        %v900 = vmax.f32 %v899, 0.0
        %v901 = vpack.c.bf16 %v900, %v900
        %s902 = scalar_lea.vmem %s383, 80
        %v903 = vld [vmem:[%s902] sm:$0xf]
        %v904 = vld [vmem:[%s902 + $0x4] sm:$0xf]
        %v905 = vld [vmem:[%s902 + $0x8] sm:$0xf]
        %v906 = vld [vmem:[%s902 + $0xc] sm:$0x1]
        %v911 = vunpack.c.l.b16 %v903
        %v912 = vunpack.c.l.b16 %v904
        %v913 = vunpack.c.l.b16 %v905
        %v914 = vunpack.c.l.b16 %v906
        %v915 = vpack.c.b16 %v912, %v911
        %v916 = vpack.c.b16 %v914, %v913
        %v919 = vsel %vm544, %v901, 0
        %v922 = vand.u32 %v916, %v551
        %924 = vmatpush.bf16.msra.mxu0 0
        %925 = vmatpush.bf16.msra.mxu0 0
        %926 = vmatpush.bf16.msra.mxu0 0
        %927 = vmatpush.bf16.msra.mxu0 0
        %928 = vmatpush.bf16.msra.mxu0 0
        %929 = vmatpush.bf16.msra.mxu0 0
        %930 = vmatpush.bf16.msra.mxu0 %v922
        %931 = vmatpush.bf16.msra.mxu0 %v915
        %932 = vmatmul.bf16.gmra.mxu0 %v919
        %v933 = vpop.f32.mrf.mxu0
        %v934 = vadd.f32 0.0, %v933
        %v935 = vpop.f32.mrf.mxu0
        %936 = vdwg.mxu0
        %v937 = vadd.f32 %v852, %v934
        %938 = vset.pattern.permute.xlu0 6
        %939 = vperm.xlu0 %938, %v403
        %v940 = vpop.permute.xlu0 %939
        %v942 = vmul.f32 %v940, %v388
        %943 = vset.pattern.permute.xlu0 6
        %944 = vperm.xlu0 %943, %v405
        %v945 = vpop.permute.xlu0 %944
        %v947 = vmul.f32 %v945, %v390
        %v948 = vadd.f32 %v942, %v947
        %949 = vset.pattern.permute.xlu0 6
        %950 = vperm.xlu0 %949, %v407
        %v951 = vpop.permute.xlu0 %950
        %v953 = vmul.f32 %v951, %v392
        %v954 = vadd.f32 %v948, %v953
        %955 = vset.pattern.permute.xlu0 6
        %956 = vperm.xlu0 %955, %v409
        %v957 = vpop.permute.xlu0 %956
        %v959 = vmul.f32 %v957, %v394
        %v960 = vadd.f32 %v954, %v959
        %961 = vset.pattern.permute.xlu0 6
        %962 = vperm.xlu0 %961, %v411
        %v963 = vpop.permute.xlu0 %962
        %v965 = vmul.f32 %v963, %v396
        %v966 = vadd.f32 %v960, %v965
        %967 = vset.pattern.permute.xlu0 6
        %968 = vperm.xlu0 %967, %v413
        %v969 = vpop.permute.xlu0 %968
        %v971 = vmul.f32 %v969, %v398
        %v972 = vadd.f32 %v966, %v971
        %973 = vset.pattern.permute.xlu0 6
        %974 = vperm.xlu0 %973, %v415
        %v975 = vpop.permute.xlu0 %974
        %v977 = vmul.f32 %v975, %v400
        %v978 = vadd.f32 %v972, %v977
        %979 = vset.pattern.permute.xlu0 6
        %980 = vperm.xlu0 %979, %v417
        %v981 = vpop.permute.xlu0 %980
        %v983 = vmul.f32 %v981, %v402
        %v984 = vadd.f32 %v978, %v983
        %v985 = vmax.f32 %v984, 0.0
        %v986 = vpack.c.bf16 %v985, %v985
        %s987 = scalar_lea.vmem %s383, 96
        %v988 = vld [vmem:[%s987] sm:$0xf]
        %v989 = vld [vmem:[%s987 + $0x4] sm:$0xf]
        %v990 = vld [vmem:[%s987 + $0x8] sm:$0xf]
        %v991 = vld [vmem:[%s987 + $0xc] sm:$0x1]
        %v996 = vunpack.c.l.b16 %v988
        %v997 = vunpack.c.l.b16 %v989
        %v998 = vunpack.c.l.b16 %v990
        %v999 = vunpack.c.l.b16 %v991
        %v1000 = vpack.c.b16 %v997, %v996
        %v1001 = vpack.c.b16 %v999, %v998
        %v1004 = vsel %vm544, %v986, 0
        %v1007 = vand.u32 %v1001, %v551
        %1009 = vmatpush.bf16.msra.mxu0 0
        %1010 = vmatpush.bf16.msra.mxu0 0
        %1011 = vmatpush.bf16.msra.mxu0 0
        %1012 = vmatpush.bf16.msra.mxu0 0
        %1013 = vmatpush.bf16.msra.mxu0 0
        %1014 = vmatpush.bf16.msra.mxu0 0
        %1015 = vmatpush.bf16.msra.mxu0 %v1007
        %1016 = vmatpush.bf16.msra.mxu0 %v1000
        %1017 = vmatmul.bf16.gmra.mxu0 %v1004
        %v1018 = vpop.f32.mrf.mxu0
        %v1019 = vadd.f32 0.0, %v1018
        %v1020 = vpop.f32.mrf.mxu0
        %1021 = vdwg.mxu0
        %v1022 = vadd.f32 %v937, %v1019
        %1023 = vset.pattern.permute.xlu0 7
        %1024 = vperm.xlu0 %1023, %v403
        %v1025 = vpop.permute.xlu0 %1024
        %v1027 = vmul.f32 %v1025, %v388
        %1028 = vset.pattern.permute.xlu0 7
        %1029 = vperm.xlu0 %1028, %v405
        %v1030 = vpop.permute.xlu0 %1029
        %v1032 = vmul.f32 %v1030, %v390
        %v1033 = vadd.f32 %v1027, %v1032
        %1034 = vset.pattern.permute.xlu0 7
        %1035 = vperm.xlu0 %1034, %v407
        %v1036 = vpop.permute.xlu0 %1035
        %v1038 = vmul.f32 %v1036, %v392
        %v1039 = vadd.f32 %v1033, %v1038
        %1040 = vset.pattern.permute.xlu0 7
        %1041 = vperm.xlu0 %1040, %v409
        %v1042 = vpop.permute.xlu0 %1041
        %v1044 = vmul.f32 %v1042, %v394
        %v1045 = vadd.f32 %v1039, %v1044
        %1046 = vset.pattern.permute.xlu0 7
        %1047 = vperm.xlu0 %1046, %v411
        %v1048 = vpop.permute.xlu0 %1047
        %v1050 = vmul.f32 %v1048, %v396
        %v1051 = vadd.f32 %v1045, %v1050
        %1052 = vset.pattern.permute.xlu0 7
        %1053 = vperm.xlu0 %1052, %v413
        %v1054 = vpop.permute.xlu0 %1053
        %v1056 = vmul.f32 %v1054, %v398
        %v1057 = vadd.f32 %v1051, %v1056
        %1058 = vset.pattern.permute.xlu0 7
        %1059 = vperm.xlu0 %1058, %v415
        %v1060 = vpop.permute.xlu0 %1059
        %v1062 = vmul.f32 %v1060, %v400
        %v1063 = vadd.f32 %v1057, %v1062
        %1064 = vset.pattern.permute.xlu0 7
        %1065 = vperm.xlu0 %1064, %v417
        %v1066 = vpop.permute.xlu0 %1065
        %v1068 = vmul.f32 %v1066, %v402
        %v1069 = vadd.f32 %v1063, %v1068
        %v1070 = vmax.f32 %v1069, 0.0
        %v1071 = vpack.c.bf16 %v1070, %v1070
        %s1072 = scalar_lea.vmem %s383, 112
        %v1073 = vld [vmem:[%s1072] sm:$0xf]
        %v1074 = vld [vmem:[%s1072 + $0x4] sm:$0xf]
        %v1075 = vld [vmem:[%s1072 + $0x8] sm:$0xf]
        %v1076 = vld [vmem:[%s1072 + $0xc] sm:$0x1]
        %v1081 = vunpack.c.l.b16 %v1073
        %v1082 = vunpack.c.l.b16 %v1074
        %v1083 = vunpack.c.l.b16 %v1075
        %v1084 = vunpack.c.l.b16 %v1076
        %v1085 = vpack.c.b16 %v1082, %v1081
        %v1086 = vpack.c.b16 %v1084, %v1083
        %v1089 = vsel %vm544, %v1071, 0
        %v1092 = vand.u32 %v1086, %v551
        %1094 = vmatpush.bf16.msra.mxu0 0
        %1095 = vmatpush.bf16.msra.mxu0 0
        %1096 = vmatpush.bf16.msra.mxu0 0
        %1097 = vmatpush.bf16.msra.mxu0 0
        %1098 = vmatpush.bf16.msra.mxu0 0
        %1099 = vmatpush.bf16.msra.mxu0 0
        %1100 = vmatpush.bf16.msra.mxu0 %v1092
        %1101 = vmatpush.bf16.msra.mxu0 %v1085
        %1102 = vmatmul.bf16.gmra.mxu0 %v1089
        %v1103 = vpop.f32.mrf.mxu0
        %v1104 = vadd.f32 0.0, %v1103
        %v1105 = vpop.f32.mrf.mxu0
        %1106 = vdwg.mxu0
        %v1107 = vadd.f32 %v1022, %v1104
        %v1108 = vld [vmem:[%s386] sm:$0x1]
        %v1110 = vperm.slane %v1108, 0
        %v1112 = vadd.f32 %v1107, %v1110
        %1113 = vst [vmem:[%s379] sm:$0xff] %v1112
        %s1114 = sand.u32 %s144, 1
        %s1115 = scalar_lea.sflag [#allocation5], %s1114
        %s1116 = sand.u32 %s144, 1
        %s1117 = smul.addr %s1116, 8
        %s1118 = scalar_lea.vmem [#allocation4], %s1117
        // Predicated region
        $region113: #{tpu_custom_call.1} parent=103 // pred_check
          %p1119 = pneg %p154
        $region114: #{tpu_custom_call.1} parent=103 // pred_check_branch
          %1121 = sbr.rel (%p1119) target = $region116
        $region115: #{tpu_custom_call.1} parent=103 // pred_region
          %1123 = vsyncadd %s1115, 0
          %s1124 = sadd.s32 %s23, %s22
          %s1125 = smul.addr %s1124, 8
          %s1126 = scalar_lea.hbm %s4, %s1125
          %s1128 = sshll.u32 %s1118, 4
          %s1129 = int_to_ptr.vmem [resolvable:$true] %s1128
          %s1130 = sshll.u32 %s1126, 4
          %s1131 = int_to_ptr.hbm [resolvable:$true] %s1130
          %1133 = dma.vmem_to_hbm [thread:$0]  %s1129, 128, %s1131, %s1115
        $region116: #{tpu_custom_call.1} parent=103 // pred_fallthru
          _
      $region104: #{tpu_custom_call.1} parent=5 // pred_fallthru
        _
      %p1134 = scmp.le.s32.totalorder 2, %s13
      // Predicated region
      $region117: #{tpu_custom_call.1} parent=5 // pred_check
        %p1135 = pneg %p1134
      $region118: #{tpu_custom_call.1} parent=5 // pred_check_branch
        %1137 = sbr.rel (%p1135) target = $region120
      $region119: #{tpu_custom_call.1} parent=5 // pred_region
        %s1138 = ssub.s32 %s13, 2
        // Predicated region
        $region121: #{tpu_custom_call.1} parent=119 // pred_check
          %p1139 = pneg %p160
        $region122: #{tpu_custom_call.1} parent=119 // pred_check_branch
          %1141 = sbr.rel (%p1139) target = $region124
        $region123: #{tpu_custom_call.1} parent=119 // pred_region
          %s1142 = sand.u32 %s145, 1
          %s1143 = scalar_lea.sflag [#allocation5], %s1142
          %s1144 = sand.u32 %s145, 1
          %s1145 = smul.addr %s1144, 8
          %s1146 = scalar_lea.vmem [#allocation4], %s1145
          %1148 = dma.done %s1143, 128
        $region124: #{tpu_custom_call.1} parent=119 // pred_fallthru
          _
      $region120: #{tpu_custom_call.1} parent=5 // pred_fallthru
        _
    $region6: #{tpu_custom_call.1} parent=1 // loop_footer
      %s17 = sadd.s32 1, %s13
    $region7: #{tpu_custom_call.1} parent=1 // loop_footer_branch
      %12 = sbr.rel target = $region3
    $region8: #{tpu_custom_call.1} parent=1 // loop_exit
      _
    %1149 = vsyncpa [#allocation5], 1
    %s1150 = scalar_lea.sflag [#allocation5], 1
    %1151 = vsyncpa %s1150, 1

</llo_original>
